<compile_context>
chip_gen: v7x
topology: tpu7x:2x2x1
jax: 0.10.0
libtpu: 0.0.40
codegen_flags: <defaults>
</compile_context>

<pallas_src>
import math

import numpy as np

import jax
import jax.numpy as jnp
from jax.experimental import pallas as pl
from jax.experimental.pallas import tpu as pltpu


# Per-layer lowering constants:
#   cin/cout : conv channels
#   width    : conv output width W (input spatial width of this layer)
#   k_in     : lane count of each input slab fed to this layer's matmuls
#   stride_in: lane stride between consecutive *valid* input positions
_LAYERS = (
    dict(cin=1,  cout=4,  width=32, k_in=32,  stride_in=1),
    dict(cin=4,  cout=8,  width=16, k_in=124, stride_in=8),
    dict(cin=8,  cout=16, width=8,  k_in=120, stride_in=16),
    dict(cin=16, cout=32, width=4,  k_in=112, stride_in=32),
)


def _round_up(n, m):
    return (n + m - 1) // m * m


def _conv_as_matmuls(w, width, k_in, stride_in):
    """Lower a 3x3 zero-padded conv over a 2-row image to matmul matrices.

    w: (3, 3, cin, cout).  Returns g: (2, 2, k_in, width*cout) f32 such that
        conv_out_row_h = in_row0 @ g[h, 0] + in_row1 @ g[h, 1]
    where in_row_hin is a lane slab whose valid value for spatial position wp and
    input channel ci sits at lane stride_in*wp + ci (all other lanes are ignored:
    their matrix rows stay zero).  Output lane layout: w*cout + co.
    """
    cin, cout = int(w.shape[2]), int(w.shape[3])
    g = jnp.zeros((2, 2, k_in, width * cout), jnp.float32)
    ci = np.arange(cin)
    co = np.arange(cout)
    for h in range(2):            # conv output row
        for hin in range(2):      # contributing (non-pad) input row
            kh = hin - h + 1      # kernel row; always in [0, 3) for H=2, pad=1
            for kw in range(3):   # kernel column
                w_lo = max(0, 1 - kw)
                w_hi = min(width, width + 1 - kw)
                if w_lo >= w_hi:
                    continue
                ws = np.arange(w_lo, w_hi)       # output positions
                wp = ws + (kw - 1)               # matching in-range input positions
                rows = (stride_in * wp)[:, None, None] + ci[None, :, None]
                cols = (cout * ws)[:, None, None] + co[None, None, :]
                vals = jnp.broadcast_to(w[kh, kw][None, :, :], (ws.size, cin, cout))
                g = g.at[h, hin, rows, cols].set(vals)
    return g


def _bias_slab(b, width):
    """Bias broadcast to the packed (w, co) lane layout: lane w*cout+co -> b[co]."""
    return jnp.tile(b.reshape(-1), width).reshape(1, -1).astype(jnp.float32)


def _fused_cnn_kernel(x_ref, g1_ref, b1_ref, g2_ref, b2_ref, g3_ref, b3_ref,
                      g4_ref, b4_ref, o_ref):
    """Whole TrainableCNN forward for one batch tile; everything stays on-chip."""

    def conv_rows(p0, p1, g_ref, b_ref):
        bias = b_ref[...]                                  # (1, 128), hoisted
        a0 = (jnp.dot(p0, g_ref[0, 0], preferred_element_type=jnp.float32)
              + jnp.dot(p1, g_ref[0, 1], preferred_element_type=jnp.float32)
              + bias)
        a1 = (jnp.dot(p0, g_ref[1, 0], preferred_element_type=jnp.float32)
              + jnp.dot(p1, g_ref[1, 1], preferred_element_type=jnp.float32)
              + bias)
        return a0, a1

    def pool_w(a, c):
        # MaxPool2d((1, 2)): pooled value for position 2*wo lands on position
        # 2*wo's lane; odd-position lanes become don't-cares (zero rows in the
        # next layer's matrix).  Single vectorized maximum, no per-column stores.
        n = a.shape[-1]
        return jnp.maximum(a[:, : n - c], a[:, c:])

    x = x_ref[...]                                         # (Bb, 64)
    p0, p1 = x[:, 0:32], x[:, 32:64]                       # the two image rows

    a0, a1 = conv_rows(p0, p1, g1_ref, b1_ref)             # (Bb, 128) conv1 rows
    p0, p1 = pool_w(a0, 4), pool_w(a1, 4)                  # (Bb, 124)
    a0, a1 = conv_rows(p0, p1, g2_ref, b2_ref)             # (Bb, 128) conv2 rows
    p0, p1 = pool_w(a0, 8), pool_w(a1, 8)                  # (Bb, 120)
    a0, a1 = conv_rows(p0, p1, g3_ref, b3_ref)             # (Bb, 128) conv3 rows
    p0, p1 = pool_w(a0, 16), pool_w(a1, 16)                # (Bb, 112)
    a0, a1 = conv_rows(p0, p1, g4_ref, b4_ref)             # (Bb, 128) conv4 rows

    # MaxPool((1,2)) then MaxPool((2,2)) over the 2x4 conv-4 map == global max.
    m = jnp.maximum(a0, a1)                                # max over H
    m = jnp.maximum(m[:, 0:64], m[:, 64:128])              # w pairs {0,2}, {1,3}
    m = jnp.maximum(m[:, 0:32], m[:, 32:64])               # remaining w pair
    o_ref[...] = jnp.abs(m).astype(o_ref.dtype)


@jax.jit
def forward(x, params):
    """Pallas implementation of TrainableCNN.forward.  x: (B, 64) float32."""
    B, L = x.shape
    assert L == 64

    # Lower the conv weights to matmul form (tiny, runs as plain XLA ops).
    mats, biases = [], []
    for (w, b), cfg in zip(params, _LAYERS):
        mats.append(_conv_as_matmuls(w, cfg["width"], cfg["k_in"], cfg["stride_in"]))
        biases.append(_bias_slab(b, cfg["width"]))

    bb = min(256, _round_up(B, 8))          # batch tile = MXU M dimension
    bp = _round_up(B, bb)
    xp = jnp.pad(x.astype(jnp.float32), ((0, bp - B), (0, 0)))

    def full(shape):
        return pl.BlockSpec(shape, lambda i, _n=len(shape): (0,) * _n)

    in_specs = [pl.BlockSpec((bb, 64), lambda i: (i, 0))]
    operands = [xp]
    for g, bs in zip(mats, biases):
        in_specs += [full(g.shape), full(bs.shape)]
        operands += [g, bs]

    out = pl.pallas_call(
        _fused_cnn_kernel,
        out_shape=jax.ShapeDtypeStruct((bp, 32), jnp.float32),
        grid=(bp // bb,),
        in_specs=in_specs,
        out_specs=pl.BlockSpec((bb, 32), lambda i: (i, 0)),
        compiler_params=pltpu.CompilerParams(dimension_semantics=("parallel",)),
    )(*operands)
    return out[:B]


def init_params(key):
    """Deterministic Kaiming-uniform-style init; weights stored as (KH,KW,Cin,Cout)."""
    shapes = [(3, 3, 1, 4), (3, 3, 4, 8), (3, 3, 8, 16), (3, 3, 16, 32)]
    params = []
    for s in shapes:
        key, kw_, kb_ = jax.random.split(key, 3)
        fan_in = s[0] * s[1] * s[2]
        bound = 1.0 / math.sqrt(fan_in)
        w = jax.random.uniform(kw_, s, jnp.float32, -bound, bound)
        b = jax.random.uniform(kb_, (1, s[3]), jnp.float32, -bound, bound)
        params.append((w, b))
    return params


def ref_forward(x, params):
    """Pure-JAX (XLA) reference mirroring the PyTorch forward (NCHW)."""
    B, L = x.shape
    a = x.reshape(B, 1, 2, L // 2)
    for w, b in params:
        wt = jnp.transpose(w, (3, 2, 0, 1))  # (Cout, Cin, KH, KW)
        a = jax.lax.conv_general_dilated(
            a, wt, window_strides=(1, 1), padding=((1, 1), (1, 1)),
            dimension_numbers=("NCHW", "OIHW", "NCHW"))
        a = a + b.reshape(1, -1, 1, 1)
        a = jax.lax.reduce_window(a, -jnp.inf, jax.lax.max,
                                  (1, 1, 1, 2), (1, 1, 1, 2), "VALID")
    a = jax.lax.reduce_window(a, -jnp.inf, jax.lax.max,
                              (1, 1, 2, 2), (1, 1, 2, 2), "VALID")
    return jnp.abs(a.reshape(B, -1))


if __name__ == "__main__":
    key = jax.random.PRNGKey(0)
    kx, kp = jax.random.split(key)
    B = 2
    x = jax.random.normal(kx, (B, 64), jnp.float32)  # (batch, 2 * 32 spectrum)
    params = init_params(kp)

    out = jax.block_until_ready(forward(x, params))
    assert out.shape == (B, 32), out.shape

    ref = ref_forward(x, params)
    assert jnp.allclose(out, ref, atol=1e-4, rtol=1e-4), (
        f"max abs diff {jnp.max(jnp.abs(out - ref))}")
    print("KERNEL_OK")
</pallas_src>

<mosaic_0001>
module attributes {stable_mosaic.version = 11 : i64} {
  func.func @_fused_cnn_kernel(%arg0: i32, %arg1: memref<8x64xf32, #tpu.memory_space<vmem>>, %arg2: memref<2x2x32x128xf32, #tpu.memory_space<vmem>>, %arg3: memref<1x128xf32, #tpu.memory_space<vmem>>, %arg4: memref<2x2x124x128xf32, #tpu.memory_space<vmem>>, %arg5: memref<1x128xf32, #tpu.memory_space<vmem>>, %arg6: memref<2x2x120x128xf32, #tpu.memory_space<vmem>>, %arg7: memref<1x128xf32, #tpu.memory_space<vmem>>, %arg8: memref<2x2x112x128xf32, #tpu.memory_space<vmem>>, %arg9: memref<1x128xf32, #tpu.memory_space<vmem>>, %arg10: memref<8x32xf32, #tpu.memory_space<vmem>>) attributes {dimension_semantics = [#tpu.dimension_semantics<parallel>], iteration_bounds = array<i64: 1>, scalar_prefetch = 0 : i64, scratch_operands = 0 : i64, tpu.core_type = #tpu.core_type<tc>, window_params = [{transform_indices = @transform_0, window_bounds = array<i64: 8, 64>}, {pipeline_mode = #tpu.pipeline_mode<synchronous>, transform_indices = @transform_1, window_bounds = array<i64: 2, 2, 32, 128>}, {pipeline_mode = #tpu.pipeline_mode<synchronous>, transform_indices = @transform_2, window_bounds = array<i64: 1, 128>}, {pipeline_mode = #tpu.pipeline_mode<synchronous>, transform_indices = @transform_3, window_bounds = array<i64: 2, 2, 124, 128>}, {pipeline_mode = #tpu.pipeline_mode<synchronous>, transform_indices = @transform_4, window_bounds = array<i64: 1, 128>}, {pipeline_mode = #tpu.pipeline_mode<synchronous>, transform_indices = @transform_5, window_bounds = array<i64: 2, 2, 120, 128>}, {pipeline_mode = #tpu.pipeline_mode<synchronous>, transform_indices = @transform_6, window_bounds = array<i64: 1, 128>}, {pipeline_mode = #tpu.pipeline_mode<synchronous>, transform_indices = @transform_7, window_bounds = array<i64: 2, 2, 112, 128>}, {pipeline_mode = #tpu.pipeline_mode<synchronous>, transform_indices = @transform_8, window_bounds = array<i64: 1, 128>}, {transform_indices = @transform_9, window_bounds = array<i64: 8, 32>}]} {
    %c0 = arith.constant 0 : index
    %c0_0 = arith.constant 0 : index
    %0 = vector.load %arg1[%c0, %c0_0] : memref<8x64xf32, #tpu.memory_space<vmem>>, vector<8x64xf32>
    %1 = vector.extract_strided_slice %0 {offsets = [0, 0], sizes = [8, 32], strides = [1, 1]} : vector<8x64xf32> to vector<8x32xf32>
    %2 = vector.extract_strided_slice %0 {offsets = [0, 32], sizes = [8, 32], strides = [1, 1]} : vector<8x64xf32> to vector<8x32xf32>
    %c0_1 = arith.constant 0 : index
    %c0_2 = arith.constant 0 : index
    %3 = vector.load %arg3[%c0_1, %c0_2] : memref<1x128xf32, #tpu.memory_space<vmem>>, vector<1x128xf32>
    %c0_3 = arith.constant 0 : index
    %c0_4 = arith.constant 0 : index
    %c0_5 = arith.constant 0 : index
    %c0_6 = arith.constant 0 : index
    %4 = vector.load %arg2[%c0_3, %c0_4, %c0_5, %c0_6] : memref<2x2x32x128xf32, #tpu.memory_space<vmem>>, vector<1x1x32x128xf32>
    %5 = vector.shape_cast %4 : vector<1x1x32x128xf32> to vector<32x128xf32>
    %cst = arith.constant dense<0.000000e+00> : vector<8x128xf32>
    %6 = tpu.matmul %1, %5, %cst {dimension_numbers = #tpu.dot_dimension_numbers<[1], [0], [0], [1], [0, 0, 1, 1], [], []>} : vector<8x32xf32>, vector<32x128xf32>, vector<8x128xf32> -> vector<8x128xf32>
    %c0_7 = arith.constant 0 : index
    %c1 = arith.constant 1 : index
    %c0_8 = arith.constant 0 : index
    %c0_9 = arith.constant 0 : index
    %7 = vector.load %arg2[%c0_7, %c1, %c0_8, %c0_9] : memref<2x2x32x128xf32, #tpu.memory_space<vmem>>, vector<1x1x32x128xf32>
    %8 = vector.shape_cast %7 : vector<1x1x32x128xf32> to vector<32x128xf32>
    %cst_10 = arith.constant dense<0.000000e+00> : vector<8x128xf32>
    %9 = tpu.matmul %2, %8, %cst_10 {dimension_numbers = #tpu.dot_dimension_numbers<[1], [0], [0], [1], [0, 0, 1, 1], [], []>} : vector<8x32xf32>, vector<32x128xf32>, vector<8x128xf32> -> vector<8x128xf32>
    %10 = arith.addf %6, %9 : vector<8x128xf32>
    %11 = vector.broadcast %3 : vector<1x128xf32> to vector<8x128xf32>
    %12 = arith.addf %10, %11 : vector<8x128xf32>
    %c1_11 = arith.constant 1 : index
    %c0_12 = arith.constant 0 : index
    %c0_13 = arith.constant 0 : index
    %c0_14 = arith.constant 0 : index
    %13 = vector.load %arg2[%c1_11, %c0_12, %c0_13, %c0_14] : memref<2x2x32x128xf32, #tpu.memory_space<vmem>>, vector<1x1x32x128xf32>
    %14 = vector.shape_cast %13 : vector<1x1x32x128xf32> to vector<32x128xf32>
    %cst_15 = arith.constant dense<0.000000e+00> : vector<8x128xf32>
    %15 = tpu.matmul %1, %14, %cst_15 {dimension_numbers = #tpu.dot_dimension_numbers<[1], [0], [0], [1], [0, 0, 1, 1], [], []>} : vector<8x32xf32>, vector<32x128xf32>, vector<8x128xf32> -> vector<8x128xf32>
    %c1_16 = arith.constant 1 : index
    %c1_17 = arith.constant 1 : index
    %c0_18 = arith.constant 0 : index
    %c0_19 = arith.constant 0 : index
    %16 = vector.load %arg2[%c1_16, %c1_17, %c0_18, %c0_19] : memref<2x2x32x128xf32, #tpu.memory_space<vmem>>, vector<1x1x32x128xf32>
    %17 = vector.shape_cast %16 : vector<1x1x32x128xf32> to vector<32x128xf32>
    %cst_20 = arith.constant dense<0.000000e+00> : vector<8x128xf32>
    %18 = tpu.matmul %2, %17, %cst_20 {dimension_numbers = #tpu.dot_dimension_numbers<[1], [0], [0], [1], [0, 0, 1, 1], [], []>} : vector<8x32xf32>, vector<32x128xf32>, vector<8x128xf32> -> vector<8x128xf32>
    %19 = arith.addf %15, %18 : vector<8x128xf32>
    %20 = vector.broadcast %3 : vector<1x128xf32> to vector<8x128xf32>
    %21 = arith.addf %19, %20 : vector<8x128xf32>
    %22 = vector.extract_strided_slice %12 {offsets = [0, 0], sizes = [8, 124], strides = [1, 1]} : vector<8x128xf32> to vector<8x124xf32>
    %23 = vector.extract_strided_slice %12 {offsets = [0, 4], sizes = [8, 124], strides = [1, 1]} : vector<8x128xf32> to vector<8x124xf32>
    %24 = arith.maximumf %22, %23 : vector<8x124xf32>
    %25 = vector.extract_strided_slice %21 {offsets = [0, 0], sizes = [8, 124], strides = [1, 1]} : vector<8x128xf32> to vector<8x124xf32>
    %26 = vector.extract_strided_slice %21 {offsets = [0, 4], sizes = [8, 124], strides = [1, 1]} : vector<8x128xf32> to vector<8x124xf32>
    %27 = arith.maximumf %25, %26 : vector<8x124xf32>
    %c0_21 = arith.constant 0 : index
    %c0_22 = arith.constant 0 : index
    %28 = vector.load %arg5[%c0_21, %c0_22] : memref<1x128xf32, #tpu.memory_space<vmem>>, vector<1x128xf32>
    %c0_23 = arith.constant 0 : index
    %c0_24 = arith.constant 0 : index
    %c0_25 = arith.constant 0 : index
    %c0_26 = arith.constant 0 : index
    %29 = vector.load %arg4[%c0_23, %c0_24, %c0_25, %c0_26] : memref<2x2x124x128xf32, #tpu.memory_space<vmem>>, vector<1x1x124x128xf32>
    %30 = vector.shape_cast %29 : vector<1x1x124x128xf32> to vector<124x128xf32>
    %cst_27 = arith.constant dense<0.000000e+00> : vector<8x128xf32>
    %31 = tpu.matmul %24, %30, %cst_27 {dimension_numbers = #tpu.dot_dimension_numbers<[1], [0], [0], [1], [0, 0, 1, 1], [], []>} : vector<8x124xf32>, vector<124x128xf32>, vector<8x128xf32> -> vector<8x128xf32>
    %c0_28 = arith.constant 0 : index
    %c1_29 = arith.constant 1 : index
    %c0_30 = arith.constant 0 : index
    %c0_31 = arith.constant 0 : index
    %32 = vector.load %arg4[%c0_28, %c1_29, %c0_30, %c0_31] : memref<2x2x124x128xf32, #tpu.memory_space<vmem>>, vector<1x1x124x128xf32>
    %33 = vector.shape_cast %32 : vector<1x1x124x128xf32> to vector<124x128xf32>
    %cst_32 = arith.constant dense<0.000000e+00> : vector<8x128xf32>
    %34 = tpu.matmul %27, %33, %cst_32 {dimension_numbers = #tpu.dot_dimension_numbers<[1], [0], [0], [1], [0, 0, 1, 1], [], []>} : vector<8x124xf32>, vector<124x128xf32>, vector<8x128xf32> -> vector<8x128xf32>
    %35 = arith.addf %31, %34 : vector<8x128xf32>
    %36 = vector.broadcast %28 : vector<1x128xf32> to vector<8x128xf32>
    %37 = arith.addf %35, %36 : vector<8x128xf32>
    %c1_33 = arith.constant 1 : index
    %c0_34 = arith.constant 0 : index
    %c0_35 = arith.constant 0 : index
    %c0_36 = arith.constant 0 : index
    %38 = vector.load %arg4[%c1_33, %c0_34, %c0_35, %c0_36] : memref<2x2x124x128xf32, #tpu.memory_space<vmem>>, vector<1x1x124x128xf32>
    %39 = vector.shape_cast %38 : vector<1x1x124x128xf32> to vector<124x128xf32>
    %cst_37 = arith.constant dense<0.000000e+00> : vector<8x128xf32>
    %40 = tpu.matmul %24, %39, %cst_37 {dimension_numbers = #tpu.dot_dimension_numbers<[1], [0], [0], [1], [0, 0, 1, 1], [], []>} : vector<8x124xf32>, vector<124x128xf32>, vector<8x128xf32> -> vector<8x128xf32>
    %c1_38 = arith.constant 1 : index
    %c1_39 = arith.constant 1 : index
    %c0_40 = arith.constant 0 : index
    %c0_41 = arith.constant 0 : index
    %41 = vector.load %arg4[%c1_38, %c1_39, %c0_40, %c0_41] : memref<2x2x124x128xf32, #tpu.memory_space<vmem>>, vector<1x1x124x128xf32>
    %42 = vector.shape_cast %41 : vector<1x1x124x128xf32> to vector<124x128xf32>
    %cst_42 = arith.constant dense<0.000000e+00> : vector<8x128xf32>
    %43 = tpu.matmul %27, %42, %cst_42 {dimension_numbers = #tpu.dot_dimension_numbers<[1], [0], [0], [1], [0, 0, 1, 1], [], []>} : vector<8x124xf32>, vector<124x128xf32>, vector<8x128xf32> -> vector<8x128xf32>
    %44 = arith.addf %40, %43 : vector<8x128xf32>
    %45 = vector.broadcast %28 : vector<1x128xf32> to vector<8x128xf32>
    %46 = arith.addf %44, %45 : vector<8x128xf32>
    %47 = vector.extract_strided_slice %37 {offsets = [0, 0], sizes = [8, 120], strides = [1, 1]} : vector<8x128xf32> to vector<8x120xf32>
    %48 = vector.extract_strided_slice %37 {offsets = [0, 8], sizes = [8, 120], strides = [1, 1]} : vector<8x128xf32> to vector<8x120xf32>
    %49 = arith.maximumf %47, %48 : vector<8x120xf32>
    %50 = vector.extract_strided_slice %46 {offsets = [0, 0], sizes = [8, 120], strides = [1, 1]} : vector<8x128xf32> to vector<8x120xf32>
    %51 = vector.extract_strided_slice %46 {offsets = [0, 8], sizes = [8, 120], strides = [1, 1]} : vector<8x128xf32> to vector<8x120xf32>
    %52 = arith.maximumf %50, %51 : vector<8x120xf32>
    %c0_43 = arith.constant 0 : index
    %c0_44 = arith.constant 0 : index
    %53 = vector.load %arg7[%c0_43, %c0_44] : memref<1x128xf32, #tpu.memory_space<vmem>>, vector<1x128xf32>
    %c0_45 = arith.constant 0 : index
    %c0_46 = arith.constant 0 : index
    %c0_47 = arith.constant 0 : index
    %c0_48 = arith.constant 0 : index
    %54 = vector.load %arg6[%c0_45, %c0_46, %c0_47, %c0_48] : memref<2x2x120x128xf32, #tpu.memory_space<vmem>>, vector<1x1x120x128xf32>
    %55 = vector.shape_cast %54 : vector<1x1x120x128xf32> to vector<120x128xf32>
    %cst_49 = arith.constant dense<0.000000e+00> : vector<8x128xf32>
    %56 = tpu.matmul %49, %55, %cst_49 {dimension_numbers = #tpu.dot_dimension_numbers<[1], [0], [0], [1], [0, 0, 1, 1], [], []>} : vector<8x120xf32>, vector<120x128xf32>, vector<8x128xf32> -> vector<8x128xf32>
    %c0_50 = arith.constant 0 : index
    %c1_51 = arith.constant 1 : index
    %c0_52 = arith.constant 0 : index
    %c0_53 = arith.constant 0 : index
    %57 = vector.load %arg6[%c0_50, %c1_51, %c0_52, %c0_53] : memref<2x2x120x128xf32, #tpu.memory_space<vmem>>, vector<1x1x120x128xf32>
    %58 = vector.shape_cast %57 : vector<1x1x120x128xf32> to vector<120x128xf32>
    %cst_54 = arith.constant dense<0.000000e+00> : vector<8x128xf32>
    %59 = tpu.matmul %52, %58, %cst_54 {dimension_numbers = #tpu.dot_dimension_numbers<[1], [0], [0], [1], [0, 0, 1, 1], [], []>} : vector<8x120xf32>, vector<120x128xf32>, vector<8x128xf32> -> vector<8x128xf32>
    %60 = arith.addf %56, %59 : vector<8x128xf32>
    %61 = vector.broadcast %53 : vector<1x128xf32> to vector<8x128xf32>
    %62 = arith.addf %60, %61 : vector<8x128xf32>
    %c1_55 = arith.constant 1 : index
    %c0_56 = arith.constant 0 : index
    %c0_57 = arith.constant 0 : index
    %c0_58 = arith.constant 0 : index
    %63 = vector.load %arg6[%c1_55, %c0_56, %c0_57, %c0_58] : memref<2x2x120x128xf32, #tpu.memory_space<vmem>>, vector<1x1x120x128xf32>
    %64 = vector.shape_cast %63 : vector<1x1x120x128xf32> to vector<120x128xf32>
    %cst_59 = arith.constant dense<0.000000e+00> : vector<8x128xf32>
    %65 = tpu.matmul %49, %64, %cst_59 {dimension_numbers = #tpu.dot_dimension_numbers<[1], [0], [0], [1], [0, 0, 1, 1], [], []>} : vector<8x120xf32>, vector<120x128xf32>, vector<8x128xf32> -> vector<8x128xf32>
    %c1_60 = arith.constant 1 : index
    %c1_61 = arith.constant 1 : index
    %c0_62 = arith.constant 0 : index
    %c0_63 = arith.constant 0 : index
    %66 = vector.load %arg6[%c1_60, %c1_61, %c0_62, %c0_63] : memref<2x2x120x128xf32, #tpu.memory_space<vmem>>, vector<1x1x120x128xf32>
    %67 = vector.shape_cast %66 : vector<1x1x120x128xf32> to vector<120x128xf32>
    %cst_64 = arith.constant dense<0.000000e+00> : vector<8x128xf32>
    %68 = tpu.matmul %52, %67, %cst_64 {dimension_numbers = #tpu.dot_dimension_numbers<[1], [0], [0], [1], [0, 0, 1, 1], [], []>} : vector<8x120xf32>, vector<120x128xf32>, vector<8x128xf32> -> vector<8x128xf32>
    %69 = arith.addf %65, %68 : vector<8x128xf32>
    %70 = vector.broadcast %53 : vector<1x128xf32> to vector<8x128xf32>
    %71 = arith.addf %69, %70 : vector<8x128xf32>
    %72 = vector.extract_strided_slice %62 {offsets = [0, 0], sizes = [8, 112], strides = [1, 1]} : vector<8x128xf32> to vector<8x112xf32>
    %73 = vector.extract_strided_slice %62 {offsets = [0, 16], sizes = [8, 112], strides = [1, 1]} : vector<8x128xf32> to vector<8x112xf32>
    %74 = arith.maximumf %72, %73 : vector<8x112xf32>
    %75 = vector.extract_strided_slice %71 {offsets = [0, 0], sizes = [8, 112], strides = [1, 1]} : vector<8x128xf32> to vector<8x112xf32>
    %76 = vector.extract_strided_slice %71 {offsets = [0, 16], sizes = [8, 112], strides = [1, 1]} : vector<8x128xf32> to vector<8x112xf32>
    %77 = arith.maximumf %75, %76 : vector<8x112xf32>
    %c0_65 = arith.constant 0 : index
    %c0_66 = arith.constant 0 : index
    %78 = vector.load %arg9[%c0_65, %c0_66] : memref<1x128xf32, #tpu.memory_space<vmem>>, vector<1x128xf32>
    %c0_67 = arith.constant 0 : index
    %c0_68 = arith.constant 0 : index
    %c0_69 = arith.constant 0 : index
    %c0_70 = arith.constant 0 : index
    %79 = vector.load %arg8[%c0_67, %c0_68, %c0_69, %c0_70] : memref<2x2x112x128xf32, #tpu.memory_space<vmem>>, vector<1x1x112x128xf32>
    %80 = vector.shape_cast %79 : vector<1x1x112x128xf32> to vector<112x128xf32>
    %cst_71 = arith.constant dense<0.000000e+00> : vector<8x128xf32>
    %81 = tpu.matmul %74, %80, %cst_71 {dimension_numbers = #tpu.dot_dimension_numbers<[1], [0], [0], [1], [0, 0, 1, 1], [], []>} : vector<8x112xf32>, vector<112x128xf32>, vector<8x128xf32> -> vector<8x128xf32>
    %c0_72 = arith.constant 0 : index
    %c1_73 = arith.constant 1 : index
    %c0_74 = arith.constant 0 : index
    %c0_75 = arith.constant 0 : index
    %82 = vector.load %arg8[%c0_72, %c1_73, %c0_74, %c0_75] : memref<2x2x112x128xf32, #tpu.memory_space<vmem>>, vector<1x1x112x128xf32>
    %83 = vector.shape_cast %82 : vector<1x1x112x128xf32> to vector<112x128xf32>
    %cst_76 = arith.constant dense<0.000000e+00> : vector<8x128xf32>
    %84 = tpu.matmul %77, %83, %cst_76 {dimension_numbers = #tpu.dot_dimension_numbers<[1], [0], [0], [1], [0, 0, 1, 1], [], []>} : vector<8x112xf32>, vector<112x128xf32>, vector<8x128xf32> -> vector<8x128xf32>
    %85 = arith.addf %81, %84 : vector<8x128xf32>
    %86 = vector.broadcast %78 : vector<1x128xf32> to vector<8x128xf32>
    %87 = arith.addf %85, %86 : vector<8x128xf32>
    %c1_77 = arith.constant 1 : index
    %c0_78 = arith.constant 0 : index
    %c0_79 = arith.constant 0 : index
    %c0_80 = arith.constant 0 : index
    %88 = vector.load %arg8[%c1_77, %c0_78, %c0_79, %c0_80] : memref<2x2x112x128xf32, #tpu.memory_space<vmem>>, vector<1x1x112x128xf32>
    %89 = vector.shape_cast %88 : vector<1x1x112x128xf32> to vector<112x128xf32>
    %cst_81 = arith.constant dense<0.000000e+00> : vector<8x128xf32>
    %90 = tpu.matmul %74, %89, %cst_81 {dimension_numbers = #tpu.dot_dimension_numbers<[1], [0], [0], [1], [0, 0, 1, 1], [], []>} : vector<8x112xf32>, vector<112x128xf32>, vector<8x128xf32> -> vector<8x128xf32>
    %c1_82 = arith.constant 1 : index
    %c1_83 = arith.constant 1 : index
    %c0_84 = arith.constant 0 : index
    %c0_85 = arith.constant 0 : index
    %91 = vector.load %arg8[%c1_82, %c1_83, %c0_84, %c0_85] : memref<2x2x112x128xf32, #tpu.memory_space<vmem>>, vector<1x1x112x128xf32>
    %92 = vector.shape_cast %91 : vector<1x1x112x128xf32> to vector<112x128xf32>
    %cst_86 = arith.constant dense<0.000000e+00> : vector<8x128xf32>
    %93 = tpu.matmul %77, %92, %cst_86 {dimension_numbers = #tpu.dot_dimension_numbers<[1], [0], [0], [1], [0, 0, 1, 1], [], []>} : vector<8x112xf32>, vector<112x128xf32>, vector<8x128xf32> -> vector<8x128xf32>
    %94 = arith.addf %90, %93 : vector<8x128xf32>
    %95 = vector.broadcast %78 : vector<1x128xf32> to vector<8x128xf32>
    %96 = arith.addf %94, %95 : vector<8x128xf32>
    %97 = arith.maximumf %87, %96 : vector<8x128xf32>
    %98 = vector.extract_strided_slice %97 {offsets = [0, 0], sizes = [8, 64], strides = [1, 1]} : vector<8x128xf32> to vector<8x64xf32>
    %99 = vector.extract_strided_slice %97 {offsets = [0, 64], sizes = [8, 64], strides = [1, 1]} : vector<8x128xf32> to vector<8x64xf32>
    %100 = arith.maximumf %98, %99 : vector<8x64xf32>
    %101 = vector.extract_strided_slice %100 {offsets = [0, 0], sizes = [8, 32], strides = [1, 1]} : vector<8x64xf32> to vector<8x32xf32>
    %102 = vector.extract_strided_slice %100 {offsets = [0, 32], sizes = [8, 32], strides = [1, 1]} : vector<8x64xf32> to vector<8x32xf32>
    %103 = arith.maximumf %101, %102 : vector<8x32xf32>
    %104 = math.absf %103 : vector<8x32xf32>
    %c0_87 = arith.constant 0 : index
    %c0_88 = arith.constant 0 : index
    %105 = vector.load %arg10[%c0_87, %c0_88] : memref<8x32xf32, #tpu.memory_space<vmem>>, vector<8x32xf32>
    tpu.vector_store %arg10[%c0_87, %c0_88], %104 {strides = array<i32>} : memref<8x32xf32, #tpu.memory_space<vmem>>, vector<8x32xf32>,
    return
  }
  func.func @transform_0(%arg0: i32) -> (i32, i32) {
    %c0_i32 = arith.constant 0 : i32
    %c0_i32_0 = arith.constant 0 : i32
    return %arg0, %c0_i32 : i32, i32
  }
  func.func @transform_1(%arg0: i32) -> (i32, i32, i32, i32) {
    %c0_i32 = arith.constant 0 : i32
    %c0_i32_0 = arith.constant 0 : i32
    %c0_i32_1 = arith.constant 0 : i32
    %c0_i32_2 = arith.constant 0 : i32
    %c0_i32_3 = arith.constant 0 : i32
    return %c0_i32, %c0_i32_0, %c0_i32_1, %c0_i32_2 : i32, i32, i32, i32
  }
  func.func @transform_2(%arg0: i32) -> (i32, i32) {
    %c0_i32 = arith.constant 0 : i32
    %c0_i32_0 = arith.constant 0 : i32
    %c0_i32_1 = arith.constant 0 : i32
    return %c0_i32, %c0_i32_0 : i32, i32
  }
  func.func @transform_3(%arg0: i32) -> (i32, i32, i32, i32) {
    %c0_i32 = arith.constant 0 : i32
    %c0_i32_0 = arith.constant 0 : i32
    %c0_i32_1 = arith.constant 0 : i32
    %c0_i32_2 = arith.constant 0 : i32
    %c0_i32_3 = arith.constant 0 : i32
    return %c0_i32, %c0_i32_0, %c0_i32_1, %c0_i32_2 : i32, i32, i32, i32
  }
  func.func @transform_4(%arg0: i32) -> (i32, i32) {
    %c0_i32 = arith.constant 0 : i32
    %c0_i32_0 = arith.constant 0 : i32
    %c0_i32_1 = arith.constant 0 : i32
    return %c0_i32, %c0_i32_0 : i32, i32
  }
  func.func @transform_5(%arg0: i32) -> (i32, i32, i32, i32) {
    %c0_i32 = arith.constant 0 : i32
    %c0_i32_0 = arith.constant 0 : i32
    %c0_i32_1 = arith.constant 0 : i32
    %c0_i32_2 = arith.constant 0 : i32
    %c0_i32_3 = arith.constant 0 : i32
    return %c0_i32, %c0_i32_0, %c0_i32_1, %c0_i32_2 : i32, i32, i32, i32
  }
  func.func @transform_6(%arg0: i32) -> (i32, i32) {
    %c0_i32 = arith.constant 0 : i32
    %c0_i32_0 = arith.constant 0 : i32
    %c0_i32_1 = arith.constant 0 : i32
    return %c0_i32, %c0_i32_0 : i32, i32
  }
  func.func @transform_7(%arg0: i32) -> (i32, i32, i32, i32) {
    %c0_i32 = arith.constant 0 : i32
    %c0_i32_0 = arith.constant 0 : i32
    %c0_i32_1 = arith.constant 0 : i32
    %c0_i32_2 = arith.constant 0 : i32
    %c0_i32_3 = arith.constant 0 : i32
    return %c0_i32, %c0_i32_0, %c0_i32_1, %c0_i32_2 : i32, i32, i32, i32
  }
  func.func @transform_8(%arg0: i32) -> (i32, i32) {
    %c0_i32 = arith.constant 0 : i32
    %c0_i32_0 = arith.constant 0 : i32
    %c0_i32_1 = arith.constant 0 : i32
    return %c0_i32, %c0_i32_0 : i32, i32
  }
  func.func @transform_9(%arg0: i32) -> (i32, i32) {
    %c0_i32 = arith.constant 0 : i32
    %c0_i32_0 = arith.constant 0 : i32
    return %arg0, %c0_i32 : i32, i32
  }
}

</mosaic_0001>

<llo_original>
// kernel: tile.30
$region0: #{tile.30}
  #allocation0 [shape = 's32[1]{0}', space=sflag, size = 0x4, scoped, tag = 'scoped memory for tile.30']
  %s0 = inlined_call_operand.vmem [shape: f32[32], index: 0, kind: input, shape index: {}]
  %s1 = inlined_call_operand.vmem [shape: f32[4,32], index: 1, kind: output, shape index: {}]
  // Predicated region
  $region2: #{tile.30} parent=0 // pred_check
    _
  $region3: #{tile.30} parent=0 // pred_check_branch
    %3 = sbr.rel (0) target = $region5
  $region4: #{tile.30} parent=0 // pred_region
    _
  $region5: #{tile.30} parent=0 // pred_fallthru
    _
  %v4 = vld [vmem:[%s0] ss:$0 sm:$0xff]
  %5 = vst [vmem:[%s1] sm:$0xf] %v4

// kernel: tile.31
$region0: #{tile.31}
  %s0 = inlined_call_operand.vmem [shape: f32[4,32], index: 0, kind: input, shape index: {}]
  %s1 = inlined_call_operand.hbm [shape: f32[1,128], index: 1, kind: output, shape index: {}]
  $region1: #{tile.31} parent=0
    #allocation0 [shape = 'u8[512]{0}', space=vmem, size = 0x400, scoped, tag = 'operand span for operand 1']
    #allocation1 [shape = 's32[1]{0}', space=sflag, size = 0x4, scoped, tag = 'scoped memory for tile.31']
    #allocation2 [shape = 'u8[4096]{0}', space=vmem, size = 0x1000, scoped, tag = 'scoped mem for output reshape']
    #allocation3 [shape = 'u8[4096]{0}', space=vmem, size = 0x1000, scoped, tag = 'scoped mem for input reshape']
    %2 = vsyncpa [#allocation1], 0
    %s4 = sshllo.u32 0, 4
    %v5 = vld [vmem:[%s0] sm:%s4]
    %6 = vst [vmem:[#allocation3] sm:%s4] %v5
    %v7 = vld [vmem:[#allocation3] sm:$0x1]
    %vm8 = vcmask 261120
    %9 = vst.msk [vmem:[#allocation2] sm:$0x1] %vm8, %v7
    %s10 = scalar_lea.vmem [#allocation3], 3
    %v11 = vld [vmem:[%s10] sm:$0x1]
    %12 = vrot.lane.b32.xlu0 %v11, 96
    %v13 = vpop.permute.xlu0 %12
    %vm14 = vcmask 1048320
    %15 = vst.msk [vmem:[#allocation2] sm:$0x1] %vm14, %v13
    %s16 = scalar_lea.vmem [#allocation3], 2
    %v17 = vld [vmem:[%s16] sm:$0x1]
    %18 = vrot.lane.b32.xlu0 %v17, 64
    %v19 = vpop.permute.xlu0 %18
    %vm20 = vcmask 785920
    %21 = vst.msk [vmem:[#allocation2] sm:$0x1] %vm20, %v19
    %s22 = scalar_lea.vmem [#allocation3], 1
    %v23 = vld [vmem:[%s22] sm:$0x1]
    %24 = vrot.lane.b32.xlu0 %v23, 32
    %v25 = vpop.permute.xlu0 %24
    %vm26 = vcmask 523520
    %27 = vst.msk [vmem:[#allocation2] sm:$0x1] %vm26, %v25
    %s29 = sshllo.u32 0, 1
    %v31 = vld [vmem:[#allocation2] sm:%s29]
    %s32 = sshllo.u32 0, 1
    %33 = vst [vmem:[#allocation0] sm:%s32] %v31
    %s35 = ssub.s32 16, 16
    %36 = vsyncadd [#allocation1], %s35
    %s38 = sshll.u32 [#allocation0], 4
    %s39 = int_to_ptr.vmem [resolvable:$true] %s38
    %41 = dma.vmem_to_hbm [thread:$0]  %s39, 16, %s1, [#allocation1]
    %42 = dma.done [#allocation1], 16
    %43 = vsyncpa [#allocation1], 1

// kernel: tile.26
$region0: #{tile.26}
  #allocation0 [shape = 's32[1]{0}', space=sflag, size = 0x4, scoped, tag = 'scoped memory for tile.26']
  %s0 = inlined_call_operand.vmem [shape: f32[16], index: 0, kind: input, shape index: {}]
  %s1 = inlined_call_operand.vmem [shape: f32[8,16], index: 1, kind: output, shape index: {}]
  // Predicated region
  $region2: #{tile.26} parent=0 // pred_check
    _
  $region3: #{tile.26} parent=0 // pred_check_branch
    %3 = sbr.rel (0) target = $region5
  $region4: #{tile.26} parent=0 // pred_region
    _
  $region5: #{tile.26} parent=0 // pred_fallthru
    _
  %v4 = vld [vmem:[%s0] ss:$0 sm:$0xff]
  %5 = vst [vmem:[%s1] sm:$0xff] %v4

// kernel: tile.27
$region0: #{tile.27}
  %s0 = inlined_call_operand.vmem [shape: f32[8,16], index: 0, kind: input, shape index: {}]
  %s1 = inlined_call_operand.hbm [shape: f32[1,128], index: 1, kind: output, shape index: {}]
  $region1: #{tile.27} parent=0
    #allocation0 [shape = 'u8[512]{0}', space=vmem, size = 0x400, scoped, tag = 'operand span for operand 1']
    #allocation1 [shape = 's32[1]{0}', space=sflag, size = 0x4, scoped, tag = 'scoped memory for tile.27']
    #allocation2 [shape = 'u8[4096]{0}', space=vmem, size = 0x1000, scoped, tag = 'scoped mem for output reshape']
    %2 = vsyncpa [#allocation1], 0
    %v3 = vld [vmem:[%s0] sm:$0x1]
    %vm4 = vcmask 130048
    %5 = vst.msk [vmem:[#allocation2] sm:$0x1] %vm4, %v3
    %s6 = scalar_lea.vmem %s0, 7
    %v7 = vld [vmem:[%s6] sm:$0x1]
    %8 = vrot.lane.b32.xlu0 %v7, 112
    %v9 = vpop.permute.xlu0 %8
    %vm10 = vcmask 1048448
    %11 = vst.msk [vmem:[#allocation2] sm:$0x1] %vm10, %v9
    %s12 = scalar_lea.vmem %s0, 6
    %v13 = vld [vmem:[%s12] sm:$0x1]
    %14 = vrot.lane.b32.xlu0 %v13, 96
    %v15 = vpop.permute.xlu0 %14
    %vm16 = vcmask 917248
    %17 = vst.msk [vmem:[#allocation2] sm:$0x1] %vm16, %v15
    %s18 = scalar_lea.vmem %s0, 5
    %v19 = vld [vmem:[%s18] sm:$0x1]
    %20 = vrot.lane.b32.xlu0 %v19, 80
    %v21 = vpop.permute.xlu0 %20
    %vm22 = vcmask 786048
    %23 = vst.msk [vmem:[#allocation2] sm:$0x1] %vm22, %v21
    %s24 = scalar_lea.vmem %s0, 4
    %v25 = vld [vmem:[%s24] sm:$0x1]
    %26 = vrot.lane.b32.xlu0 %v25, 64
    %v27 = vpop.permute.xlu0 %26
    %vm28 = vcmask 654848
    %29 = vst.msk [vmem:[#allocation2] sm:$0x1] %vm28, %v27
    %s30 = scalar_lea.vmem %s0, 3
    %v31 = vld [vmem:[%s30] sm:$0x1]
    %32 = vrot.lane.b32.xlu0 %v31, 48
    %v33 = vpop.permute.xlu0 %32
    %vm34 = vcmask 523648
    %35 = vst.msk [vmem:[#allocation2] sm:$0x1] %vm34, %v33
    %s36 = scalar_lea.vmem %s0, 2
    %v37 = vld [vmem:[%s36] sm:$0x1]
    %38 = vrot.lane.b32.xlu0 %v37, 32
    %v39 = vpop.permute.xlu0 %38
    %vm40 = vcmask 392448
    %41 = vst.msk [vmem:[#allocation2] sm:$0x1] %vm40, %v39
    %s42 = scalar_lea.vmem %s0, 1
    %v43 = vld [vmem:[%s42] sm:$0x1]
    %44 = vrot.lane.b32.xlu0 %v43, 16
    %v45 = vpop.permute.xlu0 %44
    %vm46 = vcmask 261248
    %47 = vst.msk [vmem:[#allocation2] sm:$0x1] %vm46, %v45
    %s49 = sshllo.u32 0, 1
    %v51 = vld [vmem:[#allocation2] sm:%s49]
    %s52 = sshllo.u32 0, 1
    %53 = vst [vmem:[#allocation0] sm:%s52] %v51
    %s55 = ssub.s32 16, 16
    %56 = vsyncadd [#allocation1], %s55
    %s58 = sshll.u32 [#allocation0], 4
    %s59 = int_to_ptr.vmem [resolvable:$true] %s58
    %61 = dma.vmem_to_hbm [thread:$0]  %s59, 16, %s1, [#allocation1]
    %62 = dma.done [#allocation1], 16
    %63 = vsyncpa [#allocation1], 1

// kernel: tile.22
$region0: #{tile.22}
  #allocation0 [shape = 's32[1]{0}', space=sflag, size = 0x4, scoped, tag = 'scoped memory for tile.22']
  %s0 = inlined_call_operand.vmem [shape: f32[8], index: 0, kind: input, shape index: {}]
  %s1 = inlined_call_operand.vmem [shape: f32[16,8], index: 1, kind: output, shape index: {}]
  // Predicated region
  $region2: #{tile.22} parent=0 // pred_check
    _
  $region3: #{tile.22} parent=0 // pred_check_branch
    %3 = sbr.rel (0) target = $region5
  $region4: #{tile.22} parent=0 // pred_region
    _
  $region5: #{tile.22} parent=0 // pred_fallthru
    _
  %v4 = vld [vmem:[%s0] ss:$0 sm:$0xff]
  %5 = vst [vmem:[%s1] sm:$0xff] %v4
  %s6 = scalar_lea.vmem %s1, 8
  %7 = vst [vmem:[%s6] sm:$0xff] %v4

// kernel: tile.23
$region0: #{tile.23}
  %s0 = inlined_call_operand.vmem [shape: f32[16,8], index: 0, kind: input, shape index: {}]
  %s1 = inlined_call_operand.hbm [shape: f32[1,128], index: 1, kind: output, shape index: {}]
  $region1: #{tile.23} parent=0
    #allocation0 [shape = 'u8[512]{0}', space=vmem, size = 0x400, scoped, tag = 'operand span for operand 1']
    #allocation1 [shape = 's32[1]{0}', space=sflag, size = 0x4, scoped, tag = 'scoped memory for tile.23']
    #allocation2 [shape = 'u8[4096]{0}', space=vmem, size = 0x1000, scoped, tag = 'scoped mem for output reshape']
    %2 = vsyncpa [#allocation1], 0
    %v3 = vld [vmem:[%s0] sm:$0x1]
    %vm4 = vcmask 64512
    %5 = vst.msk [vmem:[#allocation2] sm:$0x1] %vm4, %v3
    %s6 = scalar_lea.vmem %s0, 15
    %v7 = vld [vmem:[%s6] sm:$0x1]
    %8 = vrot.lane.b32.xlu0 %v7, 120
    %v9 = vpop.permute.xlu0 %8
    %vm10 = vcmask 1048512
    %11 = vst.msk [vmem:[#allocation2] sm:$0x1] %vm10, %v9
    %s12 = scalar_lea.vmem %s0, 14
    %v13 = vld [vmem:[%s12] sm:$0x1]
    %14 = vrot.lane.b32.xlu0 %v13, 112
    %v15 = vpop.permute.xlu0 %14
    %vm16 = vcmask 982912
    %17 = vst.msk [vmem:[#allocation2] sm:$0x1] %vm16, %v15
    %s18 = scalar_lea.vmem %s0, 13
    %v19 = vld [vmem:[%s18] sm:$0x1]
    %20 = vrot.lane.b32.xlu0 %v19, 104
    %v21 = vpop.permute.xlu0 %20
    %vm22 = vcmask 917312
    %23 = vst.msk [vmem:[#allocation2] sm:$0x1] %vm22, %v21
    %s24 = scalar_lea.vmem %s0, 12
    %v25 = vld [vmem:[%s24] sm:$0x1]
    %26 = vrot.lane.b32.xlu0 %v25, 96
    %v27 = vpop.permute.xlu0 %26
    %vm28 = vcmask 851712
    %29 = vst.msk [vmem:[#allocation2] sm:$0x1] %vm28, %v27
    %s30 = scalar_lea.vmem %s0, 11
    %v31 = vld [vmem:[%s30] sm:$0x1]
    %32 = vrot.lane.b32.xlu0 %v31, 88
    %v33 = vpop.permute.xlu0 %32
    %vm34 = vcmask 786112
    %35 = vst.msk [vmem:[#allocation2] sm:$0x1] %vm34, %v33
    %s36 = scalar_lea.vmem %s0, 10
    %v37 = vld [vmem:[%s36] sm:$0x1]
    %38 = vrot.lane.b32.xlu0 %v37, 80
    %v39 = vpop.permute.xlu0 %38
    %vm40 = vcmask 720512
    %41 = vst.msk [vmem:[#allocation2] sm:$0x1] %vm40, %v39
    %s42 = scalar_lea.vmem %s0, 9
    %v43 = vld [vmem:[%s42] sm:$0x1]
    %44 = vrot.lane.b32.xlu0 %v43, 72
    %v45 = vpop.permute.xlu0 %44
    %vm46 = vcmask 654912
    %47 = vst.msk [vmem:[#allocation2] sm:$0x1] %vm46, %v45
    %s48 = scalar_lea.vmem %s0, 8
    %v49 = vld [vmem:[%s48] sm:$0x1]
    %50 = vrot.lane.b32.xlu0 %v49, 64
    %v51 = vpop.permute.xlu0 %50
    %vm52 = vcmask 589312
    %53 = vst.msk [vmem:[#allocation2] sm:$0x1] %vm52, %v51
    %s54 = scalar_lea.vmem %s0, 7
    %v55 = vld [vmem:[%s54] sm:$0x1]
    %56 = vrot.lane.b32.xlu0 %v55, 56
    %v57 = vpop.permute.xlu0 %56
    %vm58 = vcmask 523712
    %59 = vst.msk [vmem:[#allocation2] sm:$0x1] %vm58, %v57
    %s60 = scalar_lea.vmem %s0, 6
    %v61 = vld [vmem:[%s60] sm:$0x1]
    %62 = vrot.lane.b32.xlu0 %v61, 48
    %v63 = vpop.permute.xlu0 %62
    %vm64 = vcmask 458112
    %65 = vst.msk [vmem:[#allocation2] sm:$0x1] %vm64, %v63
    %s66 = scalar_lea.vmem %s0, 5
    %v67 = vld [vmem:[%s66] sm:$0x1]
    %68 = vrot.lane.b32.xlu0 %v67, 40
    %v69 = vpop.permute.xlu0 %68
    %vm70 = vcmask 392512
    %71 = vst.msk [vmem:[#allocation2] sm:$0x1] %vm70, %v69
    %s72 = scalar_lea.vmem %s0, 4
    %v73 = vld [vmem:[%s72] sm:$0x1]
    %74 = vrot.lane.b32.xlu0 %v73, 32
    %v75 = vpop.permute.xlu0 %74
    %vm76 = vcmask 326912
    %77 = vst.msk [vmem:[#allocation2] sm:$0x1] %vm76, %v75
    %s78 = scalar_lea.vmem %s0, 3
    %v79 = vld [vmem:[%s78] sm:$0x1]
    %80 = vrot.lane.b32.xlu0 %v79, 24
    %v81 = vpop.permute.xlu0 %80
    %vm82 = vcmask 261312
    %83 = vst.msk [vmem:[#allocation2] sm:$0x1] %vm82, %v81
    %s84 = scalar_lea.vmem %s0, 2
    %v85 = vld [vmem:[%s84] sm:$0x1]
    %86 = vrot.lane.b32.xlu0 %v85, 16
    %v87 = vpop.permute.xlu0 %86
    %vm88 = vcmask 195712
    %89 = vst.msk [vmem:[#allocation2] sm:$0x1] %vm88, %v87
    %s90 = scalar_lea.vmem %s0, 1
    %v91 = vld [vmem:[%s90] sm:$0x1]
    %92 = vrot.lane.b32.xlu0 %v91, 8
    %v93 = vpop.permute.xlu0 %92
    %vm94 = vcmask 130112
    %95 = vst.msk [vmem:[#allocation2] sm:$0x1] %vm94, %v93
    %s97 = sshllo.u32 0, 1
    %v99 = vld [vmem:[#allocation2] sm:%s97]
    %s100 = sshllo.u32 0, 1
    %101 = vst [vmem:[#allocation0] sm:%s100] %v99
    %s103 = ssub.s32 16, 16
    %104 = vsyncadd [#allocation1], %s103
    %s106 = sshll.u32 [#allocation0], 4
    %s107 = int_to_ptr.vmem [resolvable:$true] %s106
    %109 = dma.vmem_to_hbm [thread:$0]  %s107, 16, %s1, [#allocation1]
    %110 = dma.done [#allocation1], 16
    %111 = vsyncpa [#allocation1], 1

// kernel: tile.19
$region0: #{tile.19}
  %s0 = inlined_call_operand.vmem [shape: f32[32,4], index: 0, kind: input, shape index: {}]
  %s1 = inlined_call_operand.hbm [shape: f32[1,128], index: 1, kind: output, shape index: {}]
  $region1: #{tile.19} parent=0
    #allocation0 [shape = 'u8[512]{0}', space=vmem, size = 0x400, scoped, tag = 'operand span for operand 1']
    #allocation1 [shape = 's32[1]{0}', space=sflag, size = 0x4, scoped, tag = 'scoped memory for tile.19']
    #allocation2 [shape = 'u8[4096]{0}', space=vmem, size = 0x1000, scoped, tag = 'scoped mem for output reshape']
    %2 = vsyncpa [#allocation1], 0
    %v3 = vld [vmem:[%s0] sm:$0x1]
    %vm4 = vcmask 31744
    %5 = vst.msk [vmem:[#allocation2] sm:$0x1] %vm4, %v3
    %s6 = scalar_lea.vmem %s0, 31
    %v7 = vld [vmem:[%s6] sm:$0x1]
    %8 = vrot.lane.b32.xlu0 %v7, 124
    %v9 = vpop.permute.xlu0 %8
    %vm10 = vcmask 1048544
    %11 = vst.msk [vmem:[#allocation2] sm:$0x1] %vm10, %v9
    %s12 = scalar_lea.vmem %s0, 30
    %v13 = vld [vmem:[%s12] sm:$0x1]
    %14 = vrot.lane.b32.xlu0 %v13, 120
    %v15 = vpop.permute.xlu0 %14
    %vm16 = vcmask 1015744
    %17 = vst.msk [vmem:[#allocation2] sm:$0x1] %vm16, %v15
    %s18 = scalar_lea.vmem %s0, 29
    %v19 = vld [vmem:[%s18] sm:$0x1]
    %20 = vrot.lane.b32.xlu0 %v19, 116
    %v21 = vpop.permute.xlu0 %20
    %vm22 = vcmask 982944
    %23 = vst.msk [vmem:[#allocation2] sm:$0x1] %vm22, %v21
    %s24 = scalar_lea.vmem %s0, 28
    %v25 = vld [vmem:[%s24] sm:$0x1]
    %26 = vrot.lane.b32.xlu0 %v25, 112
    %v27 = vpop.permute.xlu0 %26
    %vm28 = vcmask 950144
    %29 = vst.msk [vmem:[#allocation2] sm:$0x1] %vm28, %v27
    %s30 = scalar_lea.vmem %s0, 27
    %v31 = vld [vmem:[%s30] sm:$0x1]
    %32 = vrot.lane.b32.xlu0 %v31, 108
    %v33 = vpop.permute.xlu0 %32
    %vm34 = vcmask 917344
    %35 = vst.msk [vmem:[#allocation2] sm:$0x1] %vm34, %v33
    %s36 = scalar_lea.vmem %s0, 26
    %v37 = vld [vmem:[%s36] sm:$0x1]
    %38 = vrot.lane.b32.xlu0 %v37, 104
    %v39 = vpop.permute.xlu0 %38
    %vm40 = vcmask 884544
    %41 = vst.msk [vmem:[#allocation2] sm:$0x1] %vm40, %v39
    %s42 = scalar_lea.vmem %s0, 25
    %v43 = vld [vmem:[%s42] sm:$0x1]
    %44 = vrot.lane.b32.xlu0 %v43, 100
    %v45 = vpop.permute.xlu0 %44
    %vm46 = vcmask 851744
    %47 = vst.msk [vmem:[#allocation2] sm:$0x1] %vm46, %v45
    %s48 = scalar_lea.vmem %s0, 24
    %v49 = vld [vmem:[%s48] sm:$0x1]
    %50 = vrot.lane.b32.xlu0 %v49, 96
    %v51 = vpop.permute.xlu0 %50
    %vm52 = vcmask 818944
    %53 = vst.msk [vmem:[#allocation2] sm:$0x1] %vm52, %v51
    %s54 = scalar_lea.vmem %s0, 23
    %v55 = vld [vmem:[%s54] sm:$0x1]
    %56 = vrot.lane.b32.xlu0 %v55, 92
    %v57 = vpop.permute.xlu0 %56
    %vm58 = vcmask 786144
    %59 = vst.msk [vmem:[#allocation2] sm:$0x1] %vm58, %v57
    %s60 = scalar_lea.vmem %s0, 22
    %v61 = vld [vmem:[%s60] sm:$0x1]
    %62 = vrot.lane.b32.xlu0 %v61, 88
    %v63 = vpop.permute.xlu0 %62
    %vm64 = vcmask 753344
    %65 = vst.msk [vmem:[#allocation2] sm:$0x1] %vm64, %v63
    %s66 = scalar_lea.vmem %s0, 21
    %v67 = vld [vmem:[%s66] sm:$0x1]
    %68 = vrot.lane.b32.xlu0 %v67, 84
    %v69 = vpop.permute.xlu0 %68
    %vm70 = vcmask 720544
    %71 = vst.msk [vmem:[#allocation2] sm:$0x1] %vm70, %v69
    %s72 = scalar_lea.vmem %s0, 20
    %v73 = vld [vmem:[%s72] sm:$0x1]
    %74 = vrot.lane.b32.xlu0 %v73, 80
    %v75 = vpop.permute.xlu0 %74
    %vm76 = vcmask 687744
    %77 = vst.msk [vmem:[#allocation2] sm:$0x1] %vm76, %v75
    %s78 = scalar_lea.vmem %s0, 19
    %v79 = vld [vmem:[%s78] sm:$0x1]
    %80 = vrot.lane.b32.xlu0 %v79, 76
    %v81 = vpop.permute.xlu0 %80
    %vm82 = vcmask 654944
    %83 = vst.msk [vmem:[#allocation2] sm:$0x1] %vm82, %v81
    %s84 = scalar_lea.vmem %s0, 18
    %v85 = vld [vmem:[%s84] sm:$0x1]
    %86 = vrot.lane.b32.xlu0 %v85, 72
    %v87 = vpop.permute.xlu0 %86
    %vm88 = vcmask 622144
    %89 = vst.msk [vmem:[#allocation2] sm:$0x1] %vm88, %v87
    %s90 = scalar_lea.vmem %s0, 17
    %v91 = vld [vmem:[%s90] sm:$0x1]
    %92 = vrot.lane.b32.xlu0 %v91, 68
    %v93 = vpop.permute.xlu0 %92
    %vm94 = vcmask 589344
    %95 = vst.msk [vmem:[#allocation2] sm:$0x1] %vm94, %v93
    %s96 = scalar_lea.vmem %s0, 16
    %v97 = vld [vmem:[%s96] sm:$0x1]
    %98 = vrot.lane.b32.xlu0 %v97, 64
    %v99 = vpop.permute.xlu0 %98
    %vm100 = vcmask 556544
    %101 = vst.msk [vmem:[#allocation2] sm:$0x1] %vm100, %v99
    %s102 = scalar_lea.vmem %s0, 15
    %v103 = vld [vmem:[%s102] sm:$0x1]
    %104 = vrot.lane.b32.xlu0 %v103, 60
    %v105 = vpop.permute.xlu0 %104
    %vm106 = vcmask 523744
    %107 = vst.msk [vmem:[#allocation2] sm:$0x1] %vm106, %v105
    %s108 = scalar_lea.vmem %s0, 14
    %v109 = vld [vmem:[%s108] sm:$0x1]
    %110 = vrot.lane.b32.xlu0 %v109, 56
    %v111 = vpop.permute.xlu0 %110
    %vm112 = vcmask 490944
    %113 = vst.msk [vmem:[#allocation2] sm:$0x1] %vm112, %v111
    %s114 = scalar_lea.vmem %s0, 13
    %v115 = vld [vmem:[%s114] sm:$0x1]
    %116 = vrot.lane.b32.xlu0 %v115, 52
    %v117 = vpop.permute.xlu0 %116
    %vm118 = vcmask 458144
    %119 = vst.msk [vmem:[#allocation2] sm:$0x1] %vm118, %v117
    %s120 = scalar_lea.vmem %s0, 12
    %v121 = vld [vmem:[%s120] sm:$0x1]
    %122 = vrot.lane.b32.xlu0 %v121, 48
    %v123 = vpop.permute.xlu0 %122
    %vm124 = vcmask 425344
    %125 = vst.msk [vmem:[#allocation2] sm:$0x1] %vm124, %v123
    %s126 = scalar_lea.vmem %s0, 11
    %v127 = vld [vmem:[%s126] sm:$0x1]
    %128 = vrot.lane.b32.xlu0 %v127, 44
    %v129 = vpop.permute.xlu0 %128
    %vm130 = vcmask 392544
    %131 = vst.msk [vmem:[#allocation2] sm:$0x1] %vm130, %v129
    %s132 = scalar_lea.vmem %s0, 10
    %v133 = vld [vmem:[%s132] sm:$0x1]
    %134 = vrot.lane.b32.xlu0 %v133, 40
    %v135 = vpop.permute.xlu0 %134
    %vm136 = vcmask 359744
    %137 = vst.msk [vmem:[#allocation2] sm:$0x1] %vm136, %v135
    %s138 = scalar_lea.vmem %s0, 9
    %v139 = vld [vmem:[%s138] sm:$0x1]
    %140 = vrot.lane.b32.xlu0 %v139, 36
    %v141 = vpop.permute.xlu0 %140
    %vm142 = vcmask 326944
    %143 = vst.msk [vmem:[#allocation2] sm:$0x1] %vm142, %v141
    %s144 = scalar_lea.vmem %s0, 8
    %v145 = vld [vmem:[%s144] sm:$0x1]
    %146 = vrot.lane.b32.xlu0 %v145, 32
    %v147 = vpop.permute.xlu0 %146
    %vm148 = vcmask 294144
    %149 = vst.msk [vmem:[#allocation2] sm:$0x1] %vm148, %v147
    %s150 = scalar_lea.vmem %s0, 7
    %v151 = vld [vmem:[%s150] sm:$0x1]
    %152 = vrot.lane.b32.xlu0 %v151, 28
    %v153 = vpop.permute.xlu0 %152
    %vm154 = vcmask 261344
    %155 = vst.msk [vmem:[#allocation2] sm:$0x1] %vm154, %v153
    %s156 = scalar_lea.vmem %s0, 6
    %v157 = vld [vmem:[%s156] sm:$0x1]
    %158 = vrot.lane.b32.xlu0 %v157, 24
    %v159 = vpop.permute.xlu0 %158
    %vm160 = vcmask 228544
    %161 = vst.msk [vmem:[#allocation2] sm:$0x1] %vm160, %v159
    %s162 = scalar_lea.vmem %s0, 5
    %v163 = vld [vmem:[%s162] sm:$0x1]
    %164 = vrot.lane.b32.xlu0 %v163, 20
    %v165 = vpop.permute.xlu0 %164
    %vm166 = vcmask 195744
    %167 = vst.msk [vmem:[#allocation2] sm:$0x1] %vm166, %v165
    %s168 = scalar_lea.vmem %s0, 4
    %v169 = vld [vmem:[%s168] sm:$0x1]
    %170 = vrot.lane.b32.xlu0 %v169, 16
    %v171 = vpop.permute.xlu0 %170
    %vm172 = vcmask 162944
    %173 = vst.msk [vmem:[#allocation2] sm:$0x1] %vm172, %v171
    %s174 = scalar_lea.vmem %s0, 3
    %v175 = vld [vmem:[%s174] sm:$0x1]
    %176 = vrot.lane.b32.xlu0 %v175, 12
    %v177 = vpop.permute.xlu0 %176
    %vm178 = vcmask 130144
    %179 = vst.msk [vmem:[#allocation2] sm:$0x1] %vm178, %v177
    %s180 = scalar_lea.vmem %s0, 2
    %v181 = vld [vmem:[%s180] sm:$0x1]
    %182 = vrot.lane.b32.xlu0 %v181, 8
    %v183 = vpop.permute.xlu0 %182
    %vm184 = vcmask 97344
    %185 = vst.msk [vmem:[#allocation2] sm:$0x1] %vm184, %v183
    %s186 = scalar_lea.vmem %s0, 1
    %v187 = vld [vmem:[%s186] sm:$0x1]
    %188 = vrot.lane.b32.xlu0 %v187, 4
    %v189 = vpop.permute.xlu0 %188
    %vm190 = vcmask 64544
    %191 = vst.msk [vmem:[#allocation2] sm:$0x1] %vm190, %v189
    %s193 = sshllo.u32 0, 1
    %v195 = vld [vmem:[#allocation2] sm:%s193]
    %s196 = sshllo.u32 0, 1
    %197 = vst [vmem:[#allocation0] sm:%s196] %v195
    %s199 = ssub.s32 16, 16
    %200 = vsyncadd [#allocation1], %s199
    %s202 = sshll.u32 [#allocation0], 4
    %s203 = int_to_ptr.vmem [resolvable:$true] %s202
    %205 = dma.vmem_to_hbm [thread:$0]  %s203, 16, %s1, [#allocation1]
    %206 = dma.done [#allocation1], 16
    %207 = vsyncpa [#allocation1], 1

// kernel: forward.1
$region0: #{forward.1}
  #allocation0 [shape = 'u32[]', space=smem, size = 0x4, offset = 0x4, fixed_abs, tag = 'smem constant byte address 0x4 - core index']
  #allocation1 [shape = 'u32[144,128]{1,0:T(1,128)}', space=vmem, size = 0x12000, scoped, tag = 'internal scratch']
  %s0 = inlined_call_operand.vmem [shape: f32[8,64], index: 0, kind: input, shape index: {}]
  %s1 = inlined_call_operand.vmem [shape: f32[2,2,32,128], index: 1, kind: input, shape index: {}]
  %s2 = inlined_call_operand.vmem [shape: f32[1,128], index: 2, kind: input, shape index: {}]
  %s3 = inlined_call_operand.vmem [shape: f32[2,2,124,128], index: 3, kind: input, shape index: {}]
  %s4 = inlined_call_operand.vmem [shape: f32[1,128], index: 4, kind: input, shape index: {}]
  %s5 = inlined_call_operand.hbm [shape: f32[2,2,120,128], index: 5, kind: input, shape index: {}]
  %s6 = inlined_call_operand.vmem [shape: f32[1,128], index: 6, kind: input, shape index: {}]
  %s7 = inlined_call_operand.vmem [shape: f32[2,2,112,128], index: 7, kind: input, shape index: {}]
  %s8 = inlined_call_operand.vmem [shape: f32[1,128], index: 8, kind: input, shape index: {}]
  %s9 = inlined_call_operand.vmem [shape: f32[8,32], index: 9, kind: output, shape index: {}]
  %s10 = sld [smem:[#allocation0]]
  $region50: #{forward.1} parent=0
    _
  %s12 = ssub.s32 1, %s10
  %s13 = scalar_select 0, %s12, %s10
  $region1: #{forward.1} parent=0
    #allocation2 [shape = 'u8[245760]{0}', space=vmem, size = 0x3c000, scoped, tag = 'input window, operand 5, single buffered']
    #allocation3 [shape = 's32[1]{0}', space=sflag, size = 0x4, scoped, tag = 'scoped memory for forward.1']
    %14 = vsyncpa [#allocation3], 0
    // Predicated region
    $region2: #{forward.1} parent=1 // pred_check
      _
    $region3: #{forward.1} parent=1 // pred_check_branch
      %16 = sbr.rel (0) target = $region5
    $region4: #{forward.1} parent=1 // pred_region
      _
    $region5: #{forward.1} parent=1 // pred_fallthru
      _
    // Predicated region
    $region6: #{forward.1} parent=1 // pred_check
      _
    $region7: #{forward.1} parent=1 // pred_check_branch
      %18 = sbr.rel (0) target = $region9
    $region8: #{forward.1} parent=1 // pred_region
      _
    $region9: #{forward.1} parent=1 // pred_fallthru
      _
    // Predicated region
    $region10: #{forward.1} parent=1 // pred_check
      _
    $region11: #{forward.1} parent=1 // pred_check_branch
      %20 = sbr.rel (0) target = $region13
    $region12: #{forward.1} parent=1 // pred_region
      _
    $region13: #{forward.1} parent=1 // pred_fallthru
      _
    // Predicated region
    $region14: #{forward.1} parent=1 // pred_check
      _
    $region15: #{forward.1} parent=1 // pred_check_branch
      %22 = sbr.rel (0) target = $region17
    $region16: #{forward.1} parent=1 // pred_region
      _
    $region17: #{forward.1} parent=1 // pred_fallthru
      _
    // Predicated region
    $region18: #{forward.1} parent=1 // pred_check
      _
    $region19: #{forward.1} parent=1 // pred_check_branch
      %24 = sbr.rel (0) target = $region21
    $region20: #{forward.1} parent=1 // pred_region
      _
    $region21: #{forward.1} parent=1 // pred_fallthru
      _
    // Predicated region
    $region22: #{forward.1} parent=1 // pred_check
      _
    $region23: #{forward.1} parent=1 // pred_check_branch
      %26 = sbr.rel (0) target = $region25
    $region24: #{forward.1} parent=1 // pred_region
      %s28 = ssub.s32 7680, 7680
      %29 = vsyncadd [#allocation3], %s28
      %s30 = sshll.u32 [#allocation2], 4
      %s31 = int_to_ptr.vmem [resolvable:$true] %s30
      %36 = dma.hbm_to_vmem [thread:$0]  %s5, 7680, %s31, [#allocation3], 128, 128, 8
    $region25: #{forward.1} parent=1 // pred_fallthru
      _
    // Predicated region
    $region26: #{forward.1} parent=1 // pred_check
      _
    $region27: #{forward.1} parent=1 // pred_check_branch
      %38 = sbr.rel (0) target = $region29
    $region28: #{forward.1} parent=1 // pred_region
      _
    $region29: #{forward.1} parent=1 // pred_fallthru
      _
    // Predicated region
    $region30: #{forward.1} parent=1 // pred_check
      _
    $region31: #{forward.1} parent=1 // pred_check_branch
      %40 = sbr.rel (0) target = $region33
    $region32: #{forward.1} parent=1 // pred_region
      _
    $region33: #{forward.1} parent=1 // pred_fallthru
      _
    // Predicated region
    $region34: #{forward.1} parent=1 // pred_check
      _
    $region35: #{forward.1} parent=1 // pred_check_branch
      %42 = sbr.rel (0) target = $region37
    $region36: #{forward.1} parent=1 // pred_region
      _
    $region37: #{forward.1} parent=1 // pred_fallthru
      _
    // Predicated region
    $region38: #{forward.1} parent=1 // pred_check
      _
    $region39: #{forward.1} parent=1 // pred_check_branch
      %44 = sbr.rel (0) target = $region41
    $region40: #{forward.1} parent=1 // pred_region
      %45 = dma.done [#allocation3], 7680
    $region41: #{forward.1} parent=1 // pred_fallthru
      _
    %v46 = vld [vmem:[%s0] sm:$0xff]
    %v47 = vld [vmem:[%s2] sm:$0x1]
    %v48 = vld [vmem:[%s1] sm:$0xff]
    %v49 = vld [vmem:[%s1 + $0x8] sm:$0xff]
    %v50 = vld [vmem:[%s1 + $0x10] sm:$0xff]
    %v51 = vld [vmem:[%s1 + $0x18] sm:$0xff]
    %s52 = scalar_lea.vmem %s1, 32
    %v53 = vld [vmem:[%s52] sm:$0xff]
    %v54 = vld [vmem:[%s52 + $0x8] sm:$0xff]
    %v55 = vld [vmem:[%s52 + $0x10] sm:$0xff]
    %v56 = vld [vmem:[%s52 + $0x18] sm:$0xff]
    %58 = vrot.lane.b32.xlu0 %v46, 96
    %v59 = vpop.permute.xlu0 %58
    %vm60 = vcmask 261120
    %v61 = vsel %vm60, %v59, 0
    %63 = vmatprep.subr.mxu0 0.0
    %64 = vmatpush1.msra.mxu0 %v53
    %65 = vmatprep.subr.mxu0 0.0
    %66 = vmatpush1.msra.mxu0 %v54
    %67 = vmatprep.subr.mxu0 0.0
    %68 = vmatpush1.msra.mxu0 %v55
    %69 = vmatprep.subr.mxu0 0.0
    %70 = vmatpush1.msra.mxu0 %v56
    %71 = vmatprep.subr.mxu0 0.0
    %72 = vmatpush1.msra.mxu0 0.0
    %73 = vmatprep.subr.mxu0 0.0
    %74 = vmatpush1.msra.mxu0 0.0
    %75 = vmatprep.subr.mxu0 0.0
    %76 = vmatpush1.msra.mxu0 0.0
    %77 = vmatprep.subr.mxu0 0.0
    %78 = vmatpush1.msra.mxu0 0.0
    %79 = vmatprep.subr.mxu0 0.0
    %80 = vmatpush1.msra.mxu0 0.0
    %81 = vmatprep.subr.mxu0 0.0
    %82 = vmatpush1.msra.mxu0 0.0
    %83 = vmatprep.subr.mxu0 0.0
    %84 = vmatpush1.msra.mxu0 0.0
    %85 = vmatprep.subr.mxu0 0.0
    %86 = vmatpush1.msra.mxu0 0.0
    %87 = vmatprep.subr.mxu0 0.0
    %88 = vmatpush1.msra.mxu0 0.0
    %89 = vmatprep.subr.mxu0 0.0
    %90 = vmatpush1.msra.mxu0 0.0
    %91 = vmatprep.subr.mxu0 0.0
    %92 = vmatpush1.msra.mxu0 0.0
    %93 = vmatprep.subr.mxu0 0.0
    %94 = vmatpush1.msra.mxu0 0.0
    %95 = vmatprep.subr.mxu0 0.0
    %96 = vmatpush1.msra.mxu0 0.0
    %97 = vmatprep.subr.mxu0 0.0
    %98 = vmatpush1.msra.mxu0 0.0
    %99 = vmatprep.subr.mxu0 0.0
    %100 = vmatpush1.msra.mxu0 0.0
    %101 = vmatprep.subr.mxu0 0.0
    %102 = vmatpush1.msra.mxu0 0.0
    %103 = vmatprep.subr.mxu0 0.0
    %104 = vmatpush1.msra.mxu0 0.0
    %105 = vmatprep.subr.mxu0 0.0
    %106 = vmatpush1.msra.mxu0 0.0
    %107 = vmatprep.subr.mxu0 0.0
    %108 = vmatpush1.msra.mxu0 0.0
    %109 = vmatprep.subr.mxu0 0.0
    %110 = vmatpush1.msra.mxu0 0.0
    %111 = vmatprep.subr.mxu0 0.0
    %112 = vmatpush1.msra.mxu0 0.0
    %113 = vmatprep.subr.mxu0 0.0
    %114 = vmatpush1.msra.mxu0 0.0
    %115 = vmatprep.subr.mxu0 0.0
    %116 = vmatpush1.msra.mxu0 0.0
    %117 = vmatprep.subr.mxu0 0.0
    %118 = vmatpush1.msra.mxu0 0.0
    %119 = vmatprep.subr.mxu0 0.0
    %120 = vmatpush1.msra.mxu0 0.0
    %121 = vmatprep.subr.mxu0 0.0
    %122 = vmatpush1.msra.mxu0 0.0
    %123 = vmatprep.subr.mxu0 0.0
    %124 = vmatpush1.msra.mxu0 0.0
    %125 = vmatprep.subr.mxu0 0.0
    %126 = vmatpush1.msra.mxu0 0.0
    %127 = vmatprep.mubr.f32.mxu0 0.0
    %128 = vmatmul.mubr.f32.gmra.mrb[0].mxu0 %v61
    %v129 = vpop.f32.mrb[0].mxu0
    %v130 = vadd.f32 0.0, %v129
    %v131 = vpop.f32.mrb[0].mxu0
    %132 = vdwg.mxu0
    %v133 = vsel %vm60, %v46, 0
    %135 = vmatprep.subr.mxu0 0.0
    %136 = vmatpush1.msra.mxu0 %v48
    %137 = vmatprep.subr.mxu0 0.0
    %138 = vmatpush1.msra.mxu0 %v49
    %139 = vmatprep.subr.mxu0 0.0
    %140 = vmatpush1.msra.mxu0 %v50
    %141 = vmatprep.subr.mxu0 0.0
    %142 = vmatpush1.msra.mxu0 %v51
    %143 = vmatprep.subr.mxu0 0.0
    %144 = vmatpush1.msra.mxu0 0.0
    %145 = vmatprep.subr.mxu0 0.0
    %146 = vmatpush1.msra.mxu0 0.0
    %147 = vmatprep.subr.mxu0 0.0
    %148 = vmatpush1.msra.mxu0 0.0
    %149 = vmatprep.subr.mxu0 0.0
    %150 = vmatpush1.msra.mxu0 0.0
    %151 = vmatprep.subr.mxu0 0.0
    %152 = vmatpush1.msra.mxu0 0.0
    %153 = vmatprep.subr.mxu0 0.0
    %154 = vmatpush1.msra.mxu0 0.0
    %155 = vmatprep.subr.mxu0 0.0
    %156 = vmatpush1.msra.mxu0 0.0
    %157 = vmatprep.subr.mxu0 0.0
    %158 = vmatpush1.msra.mxu0 0.0
    %159 = vmatprep.subr.mxu0 0.0
    %160 = vmatpush1.msra.mxu0 0.0
    %161 = vmatprep.subr.mxu0 0.0
    %162 = vmatpush1.msra.mxu0 0.0
    %163 = vmatprep.subr.mxu0 0.0
    %164 = vmatpush1.msra.mxu0 0.0
    %165 = vmatprep.subr.mxu0 0.0
    %166 = vmatpush1.msra.mxu0 0.0
    %167 = vmatprep.subr.mxu0 0.0
    %168 = vmatpush1.msra.mxu0 0.0
    %169 = vmatprep.subr.mxu0 0.0
    %170 = vmatpush1.msra.mxu0 0.0
    %171 = vmatprep.subr.mxu0 0.0
    %172 = vmatpush1.msra.mxu0 0.0
    %173 = vmatprep.subr.mxu0 0.0
    %174 = vmatpush1.msra.mxu0 0.0
    %175 = vmatprep.subr.mxu0 0.0
    %176 = vmatpush1.msra.mxu0 0.0
    %177 = vmatprep.subr.mxu0 0.0
    %178 = vmatpush1.msra.mxu0 0.0
    %179 = vmatprep.subr.mxu0 0.0
    %180 = vmatpush1.msra.mxu0 0.0
    %181 = vmatprep.subr.mxu0 0.0
    %182 = vmatpush1.msra.mxu0 0.0
    %183 = vmatprep.subr.mxu0 0.0
    %184 = vmatpush1.msra.mxu0 0.0
    %185 = vmatprep.subr.mxu0 0.0
    %186 = vmatpush1.msra.mxu0 0.0
    %187 = vmatprep.subr.mxu0 0.0
    %188 = vmatpush1.msra.mxu0 0.0
    %189 = vmatprep.subr.mxu0 0.0
    %190 = vmatpush1.msra.mxu0 0.0
    %191 = vmatprep.subr.mxu0 0.0
    %192 = vmatpush1.msra.mxu0 0.0
    %193 = vmatprep.subr.mxu0 0.0
    %194 = vmatpush1.msra.mxu0 0.0
    %195 = vmatprep.subr.mxu0 0.0
    %196 = vmatpush1.msra.mxu0 0.0
    %197 = vmatprep.subr.mxu0 0.0
    %198 = vmatpush1.msra.mxu0 0.0
    %199 = vmatprep.mubr.f32.mxu0 0.0
    %200 = vmatmul.mubr.f32.gmra.mrb[0].mxu0 %v133
    %v201 = vpop.f32.mrb[0].mxu0
    %v202 = vadd.f32 %v130, %v201
    %v203 = vpop.f32.mrb[0].mxu0
    %204 = vdwg.mxu0
    %v206 = vlaneseq
    %v207 = vshrl.u32 %v206, 7
    %v208 = vsub.s32 0, %v207
    %v209 = vrot.slane %v47, %v208
    %v211 = vadd.f32 %v202, %v209
    %s212 = scalar_lea.vmem %s1, 64
    %v213 = vld [vmem:[%s212] sm:$0xff]
    %v214 = vld [vmem:[%s212 + $0x8] sm:$0xff]
    %v215 = vld [vmem:[%s212 + $0x10] sm:$0xff]
    %v216 = vld [vmem:[%s212 + $0x18] sm:$0xff]
    %s217 = scalar_lea.vmem %s1, 96
    %v218 = vld [vmem:[%s217] sm:$0xff]
    %v219 = vld [vmem:[%s217 + $0x8] sm:$0xff]
    %v220 = vld [vmem:[%s217 + $0x10] sm:$0xff]
    %v221 = vld [vmem:[%s217 + $0x18] sm:$0xff]
    %222 = vmatprep.subr.mxu0 0.0
    %223 = vmatpush1.msra.mxu0 %v218
    %224 = vmatprep.subr.mxu0 0.0
    %225 = vmatpush1.msra.mxu0 %v219
    %226 = vmatprep.subr.mxu0 0.0
    %227 = vmatpush1.msra.mxu0 %v220
    %228 = vmatprep.subr.mxu0 0.0
    %229 = vmatpush1.msra.mxu0 %v221
    %230 = vmatprep.subr.mxu0 0.0
    %231 = vmatpush1.msra.mxu0 0.0
    %232 = vmatprep.subr.mxu0 0.0
    %233 = vmatpush1.msra.mxu0 0.0
    %234 = vmatprep.subr.mxu0 0.0
    %235 = vmatpush1.msra.mxu0 0.0
    %236 = vmatprep.subr.mxu0 0.0
    %237 = vmatpush1.msra.mxu0 0.0
    %238 = vmatprep.subr.mxu0 0.0
    %239 = vmatpush1.msra.mxu0 0.0
    %240 = vmatprep.subr.mxu0 0.0
    %241 = vmatpush1.msra.mxu0 0.0
    %242 = vmatprep.subr.mxu0 0.0
    %243 = vmatpush1.msra.mxu0 0.0
    %244 = vmatprep.subr.mxu0 0.0
    %245 = vmatpush1.msra.mxu0 0.0
    %246 = vmatprep.subr.mxu0 0.0
    %247 = vmatpush1.msra.mxu0 0.0
    %248 = vmatprep.subr.mxu0 0.0
    %249 = vmatpush1.msra.mxu0 0.0
    %250 = vmatprep.subr.mxu0 0.0
    %251 = vmatpush1.msra.mxu0 0.0
    %252 = vmatprep.subr.mxu0 0.0
    %253 = vmatpush1.msra.mxu0 0.0
    %254 = vmatprep.subr.mxu0 0.0
    %255 = vmatpush1.msra.mxu0 0.0
    %256 = vmatprep.subr.mxu0 0.0
    %257 = vmatpush1.msra.mxu0 0.0
    %258 = vmatprep.subr.mxu0 0.0
    %259 = vmatpush1.msra.mxu0 0.0
    %260 = vmatprep.subr.mxu0 0.0
    %261 = vmatpush1.msra.mxu0 0.0
    %262 = vmatprep.subr.mxu0 0.0
    %263 = vmatpush1.msra.mxu0 0.0
    %264 = vmatprep.subr.mxu0 0.0
    %265 = vmatpush1.msra.mxu0 0.0
    %266 = vmatprep.subr.mxu0 0.0
    %267 = vmatpush1.msra.mxu0 0.0
    %268 = vmatprep.subr.mxu0 0.0
    %269 = vmatpush1.msra.mxu0 0.0
    %270 = vmatprep.subr.mxu0 0.0
    %271 = vmatpush1.msra.mxu0 0.0
    %272 = vmatprep.subr.mxu0 0.0
    %273 = vmatpush1.msra.mxu0 0.0
    %274 = vmatprep.subr.mxu0 0.0
    %275 = vmatpush1.msra.mxu0 0.0
    %276 = vmatprep.subr.mxu0 0.0
    %277 = vmatpush1.msra.mxu0 0.0
    %278 = vmatprep.subr.mxu0 0.0
    %279 = vmatpush1.msra.mxu0 0.0
    %280 = vmatprep.subr.mxu0 0.0
    %281 = vmatpush1.msra.mxu0 0.0
    %282 = vmatprep.subr.mxu0 0.0
    %283 = vmatpush1.msra.mxu0 0.0
    %284 = vmatprep.subr.mxu0 0.0
    %285 = vmatpush1.msra.mxu0 0.0
    %286 = vmatprep.mubr.f32.mxu0 0.0
    %287 = vmatmul.mubr.f32.gmra.mrb[0].mxu0 %v61
    %v288 = vpop.f32.mrb[0].mxu0
    %v289 = vadd.f32 0.0, %v288
    %v290 = vpop.f32.mrb[0].mxu0
    %291 = vdwg.mxu0
    %292 = vmatprep.subr.mxu0 0.0
    %293 = vmatpush1.msra.mxu0 %v213
    %294 = vmatprep.subr.mxu0 0.0
    %295 = vmatpush1.msra.mxu0 %v214
    %296 = vmatprep.subr.mxu0 0.0
    %297 = vmatpush1.msra.mxu0 %v215
    %298 = vmatprep.subr.mxu0 0.0
    %299 = vmatpush1.msra.mxu0 %v216
    %300 = vmatprep.subr.mxu0 0.0
    %301 = vmatpush1.msra.mxu0 0.0
    %302 = vmatprep.subr.mxu0 0.0
    %303 = vmatpush1.msra.mxu0 0.0
    %304 = vmatprep.subr.mxu0 0.0
    %305 = vmatpush1.msra.mxu0 0.0
    %306 = vmatprep.subr.mxu0 0.0
    %307 = vmatpush1.msra.mxu0 0.0
    %308 = vmatprep.subr.mxu0 0.0
    %309 = vmatpush1.msra.mxu0 0.0
    %310 = vmatprep.subr.mxu0 0.0
    %311 = vmatpush1.msra.mxu0 0.0
    %312 = vmatprep.subr.mxu0 0.0
    %313 = vmatpush1.msra.mxu0 0.0
    %314 = vmatprep.subr.mxu0 0.0
    %315 = vmatpush1.msra.mxu0 0.0
    %316 = vmatprep.subr.mxu0 0.0
    %317 = vmatpush1.msra.mxu0 0.0
    %318 = vmatprep.subr.mxu0 0.0
    %319 = vmatpush1.msra.mxu0 0.0
    %320 = vmatprep.subr.mxu0 0.0
    %321 = vmatpush1.msra.mxu0 0.0
    %322 = vmatprep.subr.mxu0 0.0
    %323 = vmatpush1.msra.mxu0 0.0
    %324 = vmatprep.subr.mxu0 0.0
    %325 = vmatpush1.msra.mxu0 0.0
    %326 = vmatprep.subr.mxu0 0.0
    %327 = vmatpush1.msra.mxu0 0.0
    %328 = vmatprep.subr.mxu0 0.0
    %329 = vmatpush1.msra.mxu0 0.0
    %330 = vmatprep.subr.mxu0 0.0
    %331 = vmatpush1.msra.mxu0 0.0
    %332 = vmatprep.subr.mxu0 0.0
    %333 = vmatpush1.msra.mxu0 0.0
    %334 = vmatprep.subr.mxu0 0.0
    %335 = vmatpush1.msra.mxu0 0.0
    %336 = vmatprep.subr.mxu0 0.0
    %337 = vmatpush1.msra.mxu0 0.0
    %338 = vmatprep.subr.mxu0 0.0
    %339 = vmatpush1.msra.mxu0 0.0
    %340 = vmatprep.subr.mxu0 0.0
    %341 = vmatpush1.msra.mxu0 0.0
    %342 = vmatprep.subr.mxu0 0.0
    %343 = vmatpush1.msra.mxu0 0.0
    %344 = vmatprep.subr.mxu0 0.0
    %345 = vmatpush1.msra.mxu0 0.0
    %346 = vmatprep.subr.mxu0 0.0
    %347 = vmatpush1.msra.mxu0 0.0
    %348 = vmatprep.subr.mxu0 0.0
    %349 = vmatpush1.msra.mxu0 0.0
    %350 = vmatprep.subr.mxu0 0.0
    %351 = vmatpush1.msra.mxu0 0.0
    %352 = vmatprep.subr.mxu0 0.0
    %353 = vmatpush1.msra.mxu0 0.0
    %354 = vmatprep.subr.mxu0 0.0
    %355 = vmatpush1.msra.mxu0 0.0
    %356 = vmatprep.mubr.f32.mxu0 0.0
    %357 = vmatmul.mubr.f32.gmra.mrb[0].mxu0 %v133
    %v358 = vpop.f32.mrb[0].mxu0
    %v359 = vadd.f32 %v289, %v358
    %v360 = vpop.f32.mrb[0].mxu0
    %361 = vdwg.mxu0
    %v362 = vadd.f32 %v359, %v209
    %364 = vrot.lane.b32.xlu0 %v211, 124
    %v365 = vpop.permute.xlu0 %364
    %v367 = vmax.f32 %v211, %v365
    %369 = vrot.lane.b32.xlu0 %v362, 124
    %v370 = vpop.permute.xlu0 %369
    %v372 = vmax.f32 %v362, %v370
    %v373 = vld [vmem:[%s4] sm:$0x1]
    %v374 = vld [vmem:[%s3] sm:$0xff]
    %v375 = vld [vmem:[%s3 + $0x8] sm:$0xff]
    %v376 = vld [vmem:[%s3 + $0x10] sm:$0xff]
    %v377 = vld [vmem:[%s3 + $0x18] sm:$0xff]
    %v378 = vld [vmem:[%s3 + $0x20] sm:$0xff]
    %v379 = vld [vmem:[%s3 + $0x28] sm:$0xff]
    %v380 = vld [vmem:[%s3 + $0x30] sm:$0xff]
    %v381 = vld [vmem:[%s3 + $0x38] sm:$0xff]
    %v382 = vld [vmem:[%s3 + $0x40] sm:$0xff]
    %v383 = vld [vmem:[%s3 + $0x48] sm:$0xff]
    %v384 = vld [vmem:[%s3 + $0x50] sm:$0xff]
    %v385 = vld [vmem:[%s3 + $0x58] sm:$0xff]
    %v386 = vld [vmem:[%s3 + $0x60] sm:$0xff]
    %v387 = vld [vmem:[%s3 + $0x68] sm:$0xff]
    %v388 = vld [vmem:[%s3 + $0x70] sm:$0xff]
    %v389 = vld [vmem:[%s3 + $0x78] sm:$0xf]
    %s390 = scalar_lea.vmem %s3, 128
    %v391 = vld [vmem:[%s390] sm:$0xff]
    %v392 = vld [vmem:[%s390 + $0x8] sm:$0xff]
    %v393 = vld [vmem:[%s390 + $0x10] sm:$0xff]
    %v394 = vld [vmem:[%s390 + $0x18] sm:$0xff]
    %v395 = vld [vmem:[%s390 + $0x20] sm:$0xff]
    %v396 = vld [vmem:[%s390 + $0x28] sm:$0xff]
    %v397 = vld [vmem:[%s390 + $0x30] sm:$0xff]
    %v398 = vld [vmem:[%s390 + $0x38] sm:$0xff]
    %v399 = vld [vmem:[%s390 + $0x40] sm:$0xff]
    %v400 = vld [vmem:[%s390 + $0x48] sm:$0xff]
    %v401 = vld [vmem:[%s390 + $0x50] sm:$0xff]
    %v402 = vld [vmem:[%s390 + $0x58] sm:$0xff]
    %v403 = vld [vmem:[%s390 + $0x60] sm:$0xff]
    %v404 = vld [vmem:[%s390 + $0x68] sm:$0xff]
    %v405 = vld [vmem:[%s390 + $0x70] sm:$0xff]
    %v406 = vld [vmem:[%s390 + $0x78] sm:$0xf]
    %vm407 = vcmask 1014784
    %v409 = vsel %vm407, %v372, 0
    %vm411 = vcmask 1043456
    %v413 = vsel %vm411, %v406, 0
    %415 = vmatprep.subr.mxu0 0.0
    %416 = vmatpush1.msra.mxu0 %v391
    %417 = vmatprep.subr.mxu0 0.0
    %418 = vmatpush1.msra.mxu0 %v392
    %419 = vmatprep.subr.mxu0 0.0
    %420 = vmatpush1.msra.mxu0 %v393
    %421 = vmatprep.subr.mxu0 0.0
    %422 = vmatpush1.msra.mxu0 %v394
    %423 = vmatprep.subr.mxu0 0.0
    %424 = vmatpush1.msra.mxu0 %v395
    %425 = vmatprep.subr.mxu0 0.0
    %426 = vmatpush1.msra.mxu0 %v396
    %427 = vmatprep.subr.mxu0 0.0
    %428 = vmatpush1.msra.mxu0 %v397
    %429 = vmatprep.subr.mxu0 0.0
    %430 = vmatpush1.msra.mxu0 %v398
    %431 = vmatprep.subr.mxu0 0.0
    %432 = vmatpush1.msra.mxu0 %v399
    %433 = vmatprep.subr.mxu0 0.0
    %434 = vmatpush1.msra.mxu0 %v400
    %435 = vmatprep.subr.mxu0 0.0
    %436 = vmatpush1.msra.mxu0 %v401
    %437 = vmatprep.subr.mxu0 0.0
    %438 = vmatpush1.msra.mxu0 %v402
    %439 = vmatprep.subr.mxu0 0.0
    %440 = vmatpush1.msra.mxu0 %v403
    %441 = vmatprep.subr.mxu0 0.0
    %442 = vmatpush1.msra.mxu0 %v404
    %443 = vmatprep.subr.mxu0 0.0
    %444 = vmatpush1.msra.mxu0 %v405
    %445 = vmatprep.subr.mxu0 0.0
    %446 = vmatpush1.msra.mxu0 %v413
    %447 = vmatprep.subr.mxu0 0.0
    %448 = vmatpush1.msra.mxu0 0.0
    %449 = vmatprep.subr.mxu0 0.0
    %450 = vmatpush1.msra.mxu0 0.0
    %451 = vmatprep.subr.mxu0 0.0
    %452 = vmatpush1.msra.mxu0 0.0
    %453 = vmatprep.subr.mxu0 0.0
    %454 = vmatpush1.msra.mxu0 0.0
    %455 = vmatprep.subr.mxu0 0.0
    %456 = vmatpush1.msra.mxu0 0.0
    %457 = vmatprep.subr.mxu0 0.0
    %458 = vmatpush1.msra.mxu0 0.0
    %459 = vmatprep.subr.mxu0 0.0
    %460 = vmatpush1.msra.mxu0 0.0
    %461 = vmatprep.subr.mxu0 0.0
    %462 = vmatpush1.msra.mxu0 0.0
    %463 = vmatprep.subr.mxu0 0.0
    %464 = vmatpush1.msra.mxu0 0.0
    %465 = vmatprep.subr.mxu0 0.0
    %466 = vmatpush1.msra.mxu0 0.0
    %467 = vmatprep.subr.mxu0 0.0
    %468 = vmatpush1.msra.mxu0 0.0
    %469 = vmatprep.subr.mxu0 0.0
    %470 = vmatpush1.msra.mxu0 0.0
    %471 = vmatprep.subr.mxu0 0.0
    %472 = vmatpush1.msra.mxu0 0.0
    %473 = vmatprep.subr.mxu0 0.0
    %474 = vmatpush1.msra.mxu0 0.0
    %475 = vmatprep.subr.mxu0 0.0
    %476 = vmatpush1.msra.mxu0 0.0
    %477 = vmatprep.subr.mxu0 0.0
    %478 = vmatpush1.msra.mxu0 0.0
    %479 = vmatprep.mubr.f32.mxu0 0.0
    %480 = vmatmul.mubr.f32.gmra.mrb[0].mxu0 %v409
    %v481 = vpop.f32.mrb[0].mxu0
    %v482 = vadd.f32 0.0, %v481
    %v483 = vpop.f32.mrb[0].mxu0
    %484 = vdwg.mxu0
    %v486 = vsel %vm407, %v367, 0
    %v489 = vsel %vm411, %v389, 0
    %491 = vmatprep.subr.mxu0 0.0
    %492 = vmatpush1.msra.mxu0 %v374
    %493 = vmatprep.subr.mxu0 0.0
    %494 = vmatpush1.msra.mxu0 %v375
    %495 = vmatprep.subr.mxu0 0.0
    %496 = vmatpush1.msra.mxu0 %v376
    %497 = vmatprep.subr.mxu0 0.0
    %498 = vmatpush1.msra.mxu0 %v377
    %499 = vmatprep.subr.mxu0 0.0
    %500 = vmatpush1.msra.mxu0 %v378
    %501 = vmatprep.subr.mxu0 0.0
    %502 = vmatpush1.msra.mxu0 %v379
    %503 = vmatprep.subr.mxu0 0.0
    %504 = vmatpush1.msra.mxu0 %v380
    %505 = vmatprep.subr.mxu0 0.0
    %506 = vmatpush1.msra.mxu0 %v381
    %507 = vmatprep.subr.mxu0 0.0
    %508 = vmatpush1.msra.mxu0 %v382
    %509 = vmatprep.subr.mxu0 0.0
    %510 = vmatpush1.msra.mxu0 %v383
    %511 = vmatprep.subr.mxu0 0.0
    %512 = vmatpush1.msra.mxu0 %v384
    %513 = vmatprep.subr.mxu0 0.0
    %514 = vmatpush1.msra.mxu0 %v385
    %515 = vmatprep.subr.mxu0 0.0
    %516 = vmatpush1.msra.mxu0 %v386
    %517 = vmatprep.subr.mxu0 0.0
    %518 = vmatpush1.msra.mxu0 %v387
    %519 = vmatprep.subr.mxu0 0.0
    %520 = vmatpush1.msra.mxu0 %v388
    %521 = vmatprep.subr.mxu0 0.0
    %522 = vmatpush1.msra.mxu0 %v489
    %523 = vmatprep.subr.mxu0 0.0
    %524 = vmatpush1.msra.mxu0 0.0
    %525 = vmatprep.subr.mxu0 0.0
    %526 = vmatpush1.msra.mxu0 0.0
    %527 = vmatprep.subr.mxu0 0.0
    %528 = vmatpush1.msra.mxu0 0.0
    %529 = vmatprep.subr.mxu0 0.0
    %530 = vmatpush1.msra.mxu0 0.0
    %531 = vmatprep.subr.mxu0 0.0
    %532 = vmatpush1.msra.mxu0 0.0
    %533 = vmatprep.subr.mxu0 0.0
    %534 = vmatpush1.msra.mxu0 0.0
    %535 = vmatprep.subr.mxu0 0.0
    %536 = vmatpush1.msra.mxu0 0.0
    %537 = vmatprep.subr.mxu0 0.0
    %538 = vmatpush1.msra.mxu0 0.0
    %539 = vmatprep.subr.mxu0 0.0
    %540 = vmatpush1.msra.mxu0 0.0
    %541 = vmatprep.subr.mxu0 0.0
    %542 = vmatpush1.msra.mxu0 0.0
    %543 = vmatprep.subr.mxu0 0.0
    %544 = vmatpush1.msra.mxu0 0.0
    %545 = vmatprep.subr.mxu0 0.0
    %546 = vmatpush1.msra.mxu0 0.0
    %547 = vmatprep.subr.mxu0 0.0
    %548 = vmatpush1.msra.mxu0 0.0
    %549 = vmatprep.subr.mxu0 0.0
    %550 = vmatpush1.msra.mxu0 0.0
    %551 = vmatprep.subr.mxu0 0.0
    %552 = vmatpush1.msra.mxu0 0.0
    %553 = vmatprep.subr.mxu0 0.0
    %554 = vmatpush1.msra.mxu0 0.0
    %555 = vmatprep.mubr.f32.mxu0 0.0
    %556 = vmatmul.mubr.f32.gmra.mrb[0].mxu0 %v486
    %v557 = vpop.f32.mrb[0].mxu0
    %v558 = vadd.f32 %v482, %v557
    %v559 = vpop.f32.mrb[0].mxu0
    %560 = vdwg.mxu0
    %v562 = vlaneseq
    %v563 = vshrl.u32 %v562, 7
    %v564 = vsub.s32 0, %v563
    %v565 = vrot.slane %v373, %v564
    %v567 = vadd.f32 %v558, %v565
    %s568 = scalar_lea.vmem %s3, 256
    %v569 = vld [vmem:[%s568] sm:$0xff]
    %v570 = vld [vmem:[%s568 + $0x8] sm:$0xff]
    %v571 = vld [vmem:[%s568 + $0x10] sm:$0xff]
    %v572 = vld [vmem:[%s568 + $0x18] sm:$0xff]
    %v573 = vld [vmem:[%s568 + $0x20] sm:$0xff]
    %v574 = vld [vmem:[%s568 + $0x28] sm:$0xff]
    %v575 = vld [vmem:[%s568 + $0x30] sm:$0xff]
    %v576 = vld [vmem:[%s568 + $0x38] sm:$0xff]
    %v577 = vld [vmem:[%s568 + $0x40] sm:$0xff]
    %v578 = vld [vmem:[%s568 + $0x48] sm:$0xff]
    %v579 = vld [vmem:[%s568 + $0x50] sm:$0xff]
    %v580 = vld [vmem:[%s568 + $0x58] sm:$0xff]
    %v581 = vld [vmem:[%s568 + $0x60] sm:$0xff]
    %v582 = vld [vmem:[%s568 + $0x68] sm:$0xff]
    %v583 = vld [vmem:[%s568 + $0x70] sm:$0xff]
    %v584 = vld [vmem:[%s568 + $0x78] sm:$0xf]
    %s585 = scalar_lea.vmem %s3, 384
    %v586 = vld [vmem:[%s585] sm:$0xff]
    %v587 = vld [vmem:[%s585 + $0x8] sm:$0xff]
    %v588 = vld [vmem:[%s585 + $0x10] sm:$0xff]
    %v589 = vld [vmem:[%s585 + $0x18] sm:$0xff]
    %v590 = vld [vmem:[%s585 + $0x20] sm:$0xff]
    %v591 = vld [vmem:[%s585 + $0x28] sm:$0xff]
    %v592 = vld [vmem:[%s585 + $0x30] sm:$0xff]
    %v593 = vld [vmem:[%s585 + $0x38] sm:$0xff]
    %v594 = vld [vmem:[%s585 + $0x40] sm:$0xff]
    %v595 = vld [vmem:[%s585 + $0x48] sm:$0xff]
    %v596 = vld [vmem:[%s585 + $0x50] sm:$0xff]
    %v597 = vld [vmem:[%s585 + $0x58] sm:$0xff]
    %v598 = vld [vmem:[%s585 + $0x60] sm:$0xff]
    %v599 = vld [vmem:[%s585 + $0x68] sm:$0xff]
    %v600 = vld [vmem:[%s585 + $0x70] sm:$0xff]
    %v601 = vld [vmem:[%s585 + $0x78] sm:$0xf]
    %v603 = vsel %vm411, %v601, 0
    %605 = vmatprep.subr.mxu0 0.0
    %606 = vmatpush1.msra.mxu0 %v586
    %607 = vmatprep.subr.mxu0 0.0
    %608 = vmatpush1.msra.mxu0 %v587
    %609 = vmatprep.subr.mxu0 0.0
    %610 = vmatpush1.msra.mxu0 %v588
    %611 = vmatprep.subr.mxu0 0.0
    %612 = vmatpush1.msra.mxu0 %v589
    %613 = vmatprep.subr.mxu0 0.0
    %614 = vmatpush1.msra.mxu0 %v590
    %615 = vmatprep.subr.mxu0 0.0
    %616 = vmatpush1.msra.mxu0 %v591
    %617 = vmatprep.subr.mxu0 0.0
    %618 = vmatpush1.msra.mxu0 %v592
    %619 = vmatprep.subr.mxu0 0.0
    %620 = vmatpush1.msra.mxu0 %v593
    %621 = vmatprep.subr.mxu0 0.0
    %622 = vmatpush1.msra.mxu0 %v594
    %623 = vmatprep.subr.mxu0 0.0
    %624 = vmatpush1.msra.mxu0 %v595
    %625 = vmatprep.subr.mxu0 0.0
    %626 = vmatpush1.msra.mxu0 %v596
    %627 = vmatprep.subr.mxu0 0.0
    %628 = vmatpush1.msra.mxu0 %v597
    %629 = vmatprep.subr.mxu0 0.0
    %630 = vmatpush1.msra.mxu0 %v598
    %631 = vmatprep.subr.mxu0 0.0
    %632 = vmatpush1.msra.mxu0 %v599
    %633 = vmatprep.subr.mxu0 0.0
    %634 = vmatpush1.msra.mxu0 %v600
    %635 = vmatprep.subr.mxu0 0.0
    %636 = vmatpush1.msra.mxu0 %v603
    %637 = vmatprep.subr.mxu0 0.0
    %638 = vmatpush1.msra.mxu0 0.0
    %639 = vmatprep.subr.mxu0 0.0
    %640 = vmatpush1.msra.mxu0 0.0
    %641 = vmatprep.subr.mxu0 0.0
    %642 = vmatpush1.msra.mxu0 0.0
    %643 = vmatprep.subr.mxu0 0.0
    %644 = vmatpush1.msra.mxu0 0.0
    %645 = vmatprep.subr.mxu0 0.0
    %646 = vmatpush1.msra.mxu0 0.0
    %647 = vmatprep.subr.mxu0 0.0
    %648 = vmatpush1.msra.mxu0 0.0
    %649 = vmatprep.subr.mxu0 0.0
    %650 = vmatpush1.msra.mxu0 0.0
    %651 = vmatprep.subr.mxu0 0.0
    %652 = vmatpush1.msra.mxu0 0.0
    %653 = vmatprep.subr.mxu0 0.0
    %654 = vmatpush1.msra.mxu0 0.0
    %655 = vmatprep.subr.mxu0 0.0
    %656 = vmatpush1.msra.mxu0 0.0
    %657 = vmatprep.subr.mxu0 0.0
    %658 = vmatpush1.msra.mxu0 0.0
    %659 = vmatprep.subr.mxu0 0.0
    %660 = vmatpush1.msra.mxu0 0.0
    %661 = vmatprep.subr.mxu0 0.0
    %662 = vmatpush1.msra.mxu0 0.0
    %663 = vmatprep.subr.mxu0 0.0
    %664 = vmatpush1.msra.mxu0 0.0
    %665 = vmatprep.subr.mxu0 0.0
    %666 = vmatpush1.msra.mxu0 0.0
    %667 = vmatprep.subr.mxu0 0.0
    %668 = vmatpush1.msra.mxu0 0.0
    %669 = vmatprep.mubr.f32.mxu0 0.0
    %670 = vmatmul.mubr.f32.gmra.mrb[0].mxu0 %v409
    %v671 = vpop.f32.mrb[0].mxu0
    %v672 = vadd.f32 0.0, %v671
    %v673 = vpop.f32.mrb[0].mxu0
    %674 = vdwg.mxu0
    %v676 = vsel %vm411, %v584, 0
    %678 = vmatprep.subr.mxu0 0.0
    %679 = vmatpush1.msra.mxu0 %v569
    %680 = vmatprep.subr.mxu0 0.0
    %681 = vmatpush1.msra.mxu0 %v570
    %682 = vmatprep.subr.mxu0 0.0
    %683 = vmatpush1.msra.mxu0 %v571
    %684 = vmatprep.subr.mxu0 0.0
    %685 = vmatpush1.msra.mxu0 %v572
    %686 = vmatprep.subr.mxu0 0.0
    %687 = vmatpush1.msra.mxu0 %v573
    %688 = vmatprep.subr.mxu0 0.0
    %689 = vmatpush1.msra.mxu0 %v574
    %690 = vmatprep.subr.mxu0 0.0
    %691 = vmatpush1.msra.mxu0 %v575
    %692 = vmatprep.subr.mxu0 0.0
    %693 = vmatpush1.msra.mxu0 %v576
    %694 = vmatprep.subr.mxu0 0.0
    %695 = vmatpush1.msra.mxu0 %v577
    %696 = vmatprep.subr.mxu0 0.0
    %697 = vmatpush1.msra.mxu0 %v578
    %698 = vmatprep.subr.mxu0 0.0
    %699 = vmatpush1.msra.mxu0 %v579
    %700 = vmatprep.subr.mxu0 0.0
    %701 = vmatpush1.msra.mxu0 %v580
    %702 = vmatprep.subr.mxu0 0.0
    %703 = vmatpush1.msra.mxu0 %v581
    %704 = vmatprep.subr.mxu0 0.0
    %705 = vmatpush1.msra.mxu0 %v582
    %706 = vmatprep.subr.mxu0 0.0
    %707 = vmatpush1.msra.mxu0 %v583
    %708 = vmatprep.subr.mxu0 0.0
    %709 = vmatpush1.msra.mxu0 %v676
    %710 = vmatprep.subr.mxu0 0.0
    %711 = vmatpush1.msra.mxu0 0.0
    %712 = vmatprep.subr.mxu0 0.0
    %713 = vmatpush1.msra.mxu0 0.0
    %714 = vmatprep.subr.mxu0 0.0
    %715 = vmatpush1.msra.mxu0 0.0
    %716 = vmatprep.subr.mxu0 0.0
    %717 = vmatpush1.msra.mxu0 0.0
    %718 = vmatprep.subr.mxu0 0.0
    %719 = vmatpush1.msra.mxu0 0.0
    %720 = vmatprep.subr.mxu0 0.0
    %721 = vmatpush1.msra.mxu0 0.0
    %722 = vmatprep.subr.mxu0 0.0
    %723 = vmatpush1.msra.mxu0 0.0
    %724 = vmatprep.subr.mxu0 0.0
    %725 = vmatpush1.msra.mxu0 0.0
    %726 = vmatprep.subr.mxu0 0.0
    %727 = vmatpush1.msra.mxu0 0.0
    %728 = vmatprep.subr.mxu0 0.0
    %729 = vmatpush1.msra.mxu0 0.0
    %730 = vmatprep.subr.mxu0 0.0
    %731 = vmatpush1.msra.mxu0 0.0
    %732 = vmatprep.subr.mxu0 0.0
    %733 = vmatpush1.msra.mxu0 0.0
    %734 = vmatprep.subr.mxu0 0.0
    %735 = vmatpush1.msra.mxu0 0.0
    %736 = vmatprep.subr.mxu0 0.0
    %737 = vmatpush1.msra.mxu0 0.0
    %738 = vmatprep.subr.mxu0 0.0
    %739 = vmatpush1.msra.mxu0 0.0
    %740 = vmatprep.subr.mxu0 0.0
    %741 = vmatpush1.msra.mxu0 0.0
    %742 = vmatprep.mubr.f32.mxu0 0.0
    %743 = vmatmul.mubr.f32.gmra.mrb[0].mxu0 %v486
    %v744 = vpop.f32.mrb[0].mxu0
    %v745 = vadd.f32 %v672, %v744
    %v746 = vpop.f32.mrb[0].mxu0
    %747 = vdwg.mxu0
    %v748 = vadd.f32 %v745, %v565
    %750 = vrot.lane.b32.xlu0 %v567, 120
    %v751 = vpop.permute.xlu0 %750
    %v753 = vmax.f32 %v567, %v751
    %755 = vrot.lane.b32.xlu0 %v748, 120
    %v756 = vpop.permute.xlu0 %755
    %v758 = vmax.f32 %v748, %v756
    %v759 = vld [vmem:[%s6] sm:$0x1]
    %v760 = vld [vmem:[#allocation2] sm:$0xff]
    %v761 = vld [vmem:[#allocation2 + $0x8] sm:$0xff]
    %v762 = vld [vmem:[#allocation2 + $0x10] sm:$0xff]
    %v763 = vld [vmem:[#allocation2 + $0x18] sm:$0xff]
    %v764 = vld [vmem:[#allocation2 + $0x20] sm:$0xff]
    %v765 = vld [vmem:[#allocation2 + $0x28] sm:$0xff]
    %v766 = vld [vmem:[#allocation2 + $0x30] sm:$0xff]
    %v767 = vld [vmem:[#allocation2 + $0x38] sm:$0xff]
    %v768 = vld [vmem:[#allocation2 + $0x40] sm:$0xff]
    %v769 = vld [vmem:[#allocation2 + $0x48] sm:$0xff]
    %v770 = vld [vmem:[#allocation2 + $0x50] sm:$0xff]
    %v771 = vld [vmem:[#allocation2 + $0x58] sm:$0xff]
    %v772 = vld [vmem:[#allocation2 + $0x60] sm:$0xff]
    %v773 = vld [vmem:[#allocation2 + $0x68] sm:$0xff]
    %v774 = vld [vmem:[#allocation2 + $0x70] sm:$0xff]
    %s775 = scalar_lea.vmem [#allocation2], 120
    %v776 = vld [vmem:[%s775] sm:$0xff]
    %v777 = vld [vmem:[%s775 + $0x8] sm:$0xff]
    %v778 = vld [vmem:[%s775 + $0x10] sm:$0xff]
    %v779 = vld [vmem:[%s775 + $0x18] sm:$0xff]
    %v780 = vld [vmem:[%s775 + $0x20] sm:$0xff]
    %v781 = vld [vmem:[%s775 + $0x28] sm:$0xff]
    %v782 = vld [vmem:[%s775 + $0x30] sm:$0xff]
    %v783 = vld [vmem:[%s775 + $0x38] sm:$0xff]
    %v784 = vld [vmem:[%s775 + $0x40] sm:$0xff]
    %v785 = vld [vmem:[%s775 + $0x48] sm:$0xff]
    %v786 = vld [vmem:[%s775 + $0x50] sm:$0xff]
    %v787 = vld [vmem:[%s775 + $0x58] sm:$0xff]
    %v788 = vld [vmem:[%s775 + $0x60] sm:$0xff]
    %v789 = vld [vmem:[%s775 + $0x68] sm:$0xff]
    %v790 = vld [vmem:[%s775 + $0x70] sm:$0xff]
    %vm791 = vcmask 982016
    %v793 = vsel %vm791, %v758, 0
    %795 = vmatprep.subr.mxu0 0.0
    %796 = vmatpush1.msra.mxu0 %v776
    %797 = vmatprep.subr.mxu0 0.0
    %798 = vmatpush1.msra.mxu0 %v777
    %799 = vmatprep.subr.mxu0 0.0
    %800 = vmatpush1.msra.mxu0 %v778
    %801 = vmatprep.subr.mxu0 0.0
    %802 = vmatpush1.msra.mxu0 %v779
    %803 = vmatprep.subr.mxu0 0.0
    %804 = vmatpush1.msra.mxu0 %v780
    %805 = vmatprep.subr.mxu0 0.0
    %806 = vmatpush1.msra.mxu0 %v781
    %807 = vmatprep.subr.mxu0 0.0
    %808 = vmatpush1.msra.mxu0 %v782
    %809 = vmatprep.subr.mxu0 0.0
    %810 = vmatpush1.msra.mxu0 %v783
    %811 = vmatprep.subr.mxu0 0.0
    %812 = vmatpush1.msra.mxu0 %v784
    %813 = vmatprep.subr.mxu0 0.0
    %814 = vmatpush1.msra.mxu0 %v785
    %815 = vmatprep.subr.mxu0 0.0
    %816 = vmatpush1.msra.mxu0 %v786
    %817 = vmatprep.subr.mxu0 0.0
    %818 = vmatpush1.msra.mxu0 %v787
    %819 = vmatprep.subr.mxu0 0.0
    %820 = vmatpush1.msra.mxu0 %v788
    %821 = vmatprep.subr.mxu0 0.0
    %822 = vmatpush1.msra.mxu0 %v789
    %823 = vmatprep.subr.mxu0 0.0
    %824 = vmatpush1.msra.mxu0 %v790
    %825 = vmatprep.subr.mxu0 0.0
    %826 = vmatpush1.msra.mxu0 0.0
    %827 = vmatprep.subr.mxu0 0.0
    %828 = vmatpush1.msra.mxu0 0.0
    %829 = vmatprep.subr.mxu0 0.0
    %830 = vmatpush1.msra.mxu0 0.0
    %831 = vmatprep.subr.mxu0 0.0
    %832 = vmatpush1.msra.mxu0 0.0
    %833 = vmatprep.subr.mxu0 0.0
    %834 = vmatpush1.msra.mxu0 0.0
    %835 = vmatprep.subr.mxu0 0.0
    %836 = vmatpush1.msra.mxu0 0.0
    %837 = vmatprep.subr.mxu0 0.0
    %838 = vmatpush1.msra.mxu0 0.0
    %839 = vmatprep.subr.mxu0 0.0
    %840 = vmatpush1.msra.mxu0 0.0
    %841 = vmatprep.subr.mxu0 0.0
    %842 = vmatpush1.msra.mxu0 0.0
    %843 = vmatprep.subr.mxu0 0.0
    %844 = vmatpush1.msra.mxu0 0.0
    %845 = vmatprep.subr.mxu0 0.0
    %846 = vmatpush1.msra.mxu0 0.0
    %847 = vmatprep.subr.mxu0 0.0
    %848 = vmatpush1.msra.mxu0 0.0
    %849 = vmatprep.subr.mxu0 0.0
    %850 = vmatpush1.msra.mxu0 0.0
    %851 = vmatprep.subr.mxu0 0.0
    %852 = vmatpush1.msra.mxu0 0.0
    %853 = vmatprep.subr.mxu0 0.0
    %854 = vmatpush1.msra.mxu0 0.0
    %855 = vmatprep.subr.mxu0 0.0
    %856 = vmatpush1.msra.mxu0 0.0
    %857 = vmatprep.subr.mxu0 0.0
    %858 = vmatpush1.msra.mxu0 0.0
    %859 = vmatprep.mubr.f32.mxu0 0.0
    %860 = vmatmul.mubr.f32.gmra.mrb[0].mxu0 %v793
    %v861 = vpop.f32.mrb[0].mxu0
    %v862 = vadd.f32 0.0, %v861
    %v863 = vpop.f32.mrb[0].mxu0
    %864 = vdwg.mxu0
    %v866 = vsel %vm791, %v753, 0
    %868 = vmatprep.subr.mxu0 0.0
    %869 = vmatpush1.msra.mxu0 %v760
    %870 = vmatprep.subr.mxu0 0.0
    %871 = vmatpush1.msra.mxu0 %v761
    %872 = vmatprep.subr.mxu0 0.0
    %873 = vmatpush1.msra.mxu0 %v762
    %874 = vmatprep.subr.mxu0 0.0
    %875 = vmatpush1.msra.mxu0 %v763
    %876 = vmatprep.subr.mxu0 0.0
    %877 = vmatpush1.msra.mxu0 %v764
    %878 = vmatprep.subr.mxu0 0.0
    %879 = vmatpush1.msra.mxu0 %v765
    %880 = vmatprep.subr.mxu0 0.0
    %881 = vmatpush1.msra.mxu0 %v766
    %882 = vmatprep.subr.mxu0 0.0
    %883 = vmatpush1.msra.mxu0 %v767
    %884 = vmatprep.subr.mxu0 0.0
    %885 = vmatpush1.msra.mxu0 %v768
    %886 = vmatprep.subr.mxu0 0.0
    %887 = vmatpush1.msra.mxu0 %v769
    %888 = vmatprep.subr.mxu0 0.0
    %889 = vmatpush1.msra.mxu0 %v770
    %890 = vmatprep.subr.mxu0 0.0
    %891 = vmatpush1.msra.mxu0 %v771
    %892 = vmatprep.subr.mxu0 0.0
    %893 = vmatpush1.msra.mxu0 %v772
    %894 = vmatprep.subr.mxu0 0.0
    %895 = vmatpush1.msra.mxu0 %v773
    %896 = vmatprep.subr.mxu0 0.0
    %897 = vmatpush1.msra.mxu0 %v774
    %898 = vmatprep.subr.mxu0 0.0
    %899 = vmatpush1.msra.mxu0 0.0
    %900 = vmatprep.subr.mxu0 0.0
    %901 = vmatpush1.msra.mxu0 0.0
    %902 = vmatprep.subr.mxu0 0.0
    %903 = vmatpush1.msra.mxu0 0.0
    %904 = vmatprep.subr.mxu0 0.0
    %905 = vmatpush1.msra.mxu0 0.0
    %906 = vmatprep.subr.mxu0 0.0
    %907 = vmatpush1.msra.mxu0 0.0
    %908 = vmatprep.subr.mxu0 0.0
    %909 = vmatpush1.msra.mxu0 0.0
    %910 = vmatprep.subr.mxu0 0.0
    %911 = vmatpush1.msra.mxu0 0.0
    %912 = vmatprep.subr.mxu0 0.0
    %913 = vmatpush1.msra.mxu0 0.0
    %914 = vmatprep.subr.mxu0 0.0
    %915 = vmatpush1.msra.mxu0 0.0
    %916 = vmatprep.subr.mxu0 0.0
    %917 = vmatpush1.msra.mxu0 0.0
    %918 = vmatprep.subr.mxu0 0.0
    %919 = vmatpush1.msra.mxu0 0.0
    %920 = vmatprep.subr.mxu0 0.0
    %921 = vmatpush1.msra.mxu0 0.0
    %922 = vmatprep.subr.mxu0 0.0
    %923 = vmatpush1.msra.mxu0 0.0
    %924 = vmatprep.subr.mxu0 0.0
    %925 = vmatpush1.msra.mxu0 0.0
    %926 = vmatprep.subr.mxu0 0.0
    %927 = vmatpush1.msra.mxu0 0.0
    %928 = vmatprep.subr.mxu0 0.0
    %929 = vmatpush1.msra.mxu0 0.0
    %930 = vmatprep.subr.mxu0 0.0
    %931 = vmatpush1.msra.mxu0 0.0
    %932 = vmatprep.mubr.f32.mxu0 0.0
    %933 = vmatmul.mubr.f32.gmra.mrb[0].mxu0 %v866
    %v934 = vpop.f32.mrb[0].mxu0
    %v935 = vadd.f32 %v862, %v934
    %v936 = vpop.f32.mrb[0].mxu0
    %937 = vdwg.mxu0
    %v939 = vlaneseq
    %v940 = vshrl.u32 %v939, 7
    %v941 = vsub.s32 0, %v940
    %v942 = vrot.slane %v759, %v941
    %v944 = vadd.f32 %v935, %v942
    %s945 = scalar_lea.vmem [#allocation2], 240
    %v946 = vld [vmem:[%s945] sm:$0xff]
    %v947 = vld [vmem:[%s945 + $0x8] sm:$0xff]
    %v948 = vld [vmem:[%s945 + $0x10] sm:$0xff]
    %v949 = vld [vmem:[%s945 + $0x18] sm:$0xff]
    %v950 = vld [vmem:[%s945 + $0x20] sm:$0xff]
    %v951 = vld [vmem:[%s945 + $0x28] sm:$0xff]
    %v952 = vld [vmem:[%s945 + $0x30] sm:$0xff]
    %v953 = vld [vmem:[%s945 + $0x38] sm:$0xff]
    %v954 = vld [vmem:[%s945 + $0x40] sm:$0xff]
    %v955 = vld [vmem:[%s945 + $0x48] sm:$0xff]
    %v956 = vld [vmem:[%s945 + $0x50] sm:$0xff]
    %v957 = vld [vmem:[%s945 + $0x58] sm:$0xff]
    %v958 = vld [vmem:[%s945 + $0x60] sm:$0xff]
    %v959 = vld [vmem:[%s945 + $0x68] sm:$0xff]
    %v960 = vld [vmem:[%s945 + $0x70] sm:$0xff]
    %s961 = scalar_lea.vmem [#allocation2], 360
    %v962 = vld [vmem:[%s961] sm:$0xff]
    %v963 = vld [vmem:[%s961 + $0x8] sm:$0xff]
    %v964 = vld [vmem:[%s961 + $0x10] sm:$0xff]
    %v965 = vld [vmem:[%s961 + $0x18] sm:$0xff]
    %v966 = vld [vmem:[%s961 + $0x20] sm:$0xff]
    %v967 = vld [vmem:[%s961 + $0x28] sm:$0xff]
    %v968 = vld [vmem:[%s961 + $0x30] sm:$0xff]
    %v969 = vld [vmem:[%s961 + $0x38] sm:$0xff]
    %v970 = vld [vmem:[%s961 + $0x40] sm:$0xff]
    %v971 = vld [vmem:[%s961 + $0x48] sm:$0xff]
    %v972 = vld [vmem:[%s961 + $0x50] sm:$0xff]
    %v973 = vld [vmem:[%s961 + $0x58] sm:$0xff]
    %v974 = vld [vmem:[%s961 + $0x60] sm:$0xff]
    %v975 = vld [vmem:[%s961 + $0x68] sm:$0xff]
    %v976 = vld [vmem:[%s961 + $0x70] sm:$0xff]
    %977 = vmatprep.subr.mxu0 0.0
    %978 = vmatpush1.msra.mxu0 %v962
    %979 = vmatprep.subr.mxu0 0.0
    %980 = vmatpush1.msra.mxu0 %v963
    %981 = vmatprep.subr.mxu0 0.0
    %982 = vmatpush1.msra.mxu0 %v964
    %983 = vmatprep.subr.mxu0 0.0
    %984 = vmatpush1.msra.mxu0 %v965
    %985 = vmatprep.subr.mxu0 0.0
    %986 = vmatpush1.msra.mxu0 %v966
    %987 = vmatprep.subr.mxu0 0.0
    %988 = vmatpush1.msra.mxu0 %v967
    %989 = vmatprep.subr.mxu0 0.0
    %990 = vmatpush1.msra.mxu0 %v968
    %991 = vmatprep.subr.mxu0 0.0
    %992 = vmatpush1.msra.mxu0 %v969
    %993 = vmatprep.subr.mxu0 0.0
    %994 = vmatpush1.msra.mxu0 %v970
    %995 = vmatprep.subr.mxu0 0.0
    %996 = vmatpush1.msra.mxu0 %v971
    %997 = vmatprep.subr.mxu0 0.0
    %998 = vmatpush1.msra.mxu0 %v972
    %999 = vmatprep.subr.mxu0 0.0
    %1000 = vmatpush1.msra.mxu0 %v973
    %1001 = vmatprep.subr.mxu0 0.0
    %1002 = vmatpush1.msra.mxu0 %v974
    %1003 = vmatprep.subr.mxu0 0.0
    %1004 = vmatpush1.msra.mxu0 %v975
    %1005 = vmatprep.subr.mxu0 0.0
    %1006 = vmatpush1.msra.mxu0 %v976
    %1007 = vmatprep.subr.mxu0 0.0
    %1008 = vmatpush1.msra.mxu0 0.0
    %1009 = vmatprep.subr.mxu0 0.0
    %1010 = vmatpush1.msra.mxu0 0.0
    %1011 = vmatprep.subr.mxu0 0.0
    %1012 = vmatpush1.msra.mxu0 0.0
    %1013 = vmatprep.subr.mxu0 0.0
    %1014 = vmatpush1.msra.mxu0 0.0
    %1015 = vmatprep.subr.mxu0 0.0
    %1016 = vmatpush1.msra.mxu0 0.0
    %1017 = vmatprep.subr.mxu0 0.0
    %1018 = vmatpush1.msra.mxu0 0.0
    %1019 = vmatprep.subr.mxu0 0.0
    %1020 = vmatpush1.msra.mxu0 0.0
    %1021 = vmatprep.subr.mxu0 0.0
    %1022 = vmatpush1.msra.mxu0 0.0
    %1023 = vmatprep.subr.mxu0 0.0
    %1024 = vmatpush1.msra.mxu0 0.0
    %1025 = vmatprep.subr.mxu0 0.0
    %1026 = vmatpush1.msra.mxu0 0.0
    %1027 = vmatprep.subr.mxu0 0.0
    %1028 = vmatpush1.msra.mxu0 0.0
    %1029 = vmatprep.subr.mxu0 0.0
    %1030 = vmatpush1.msra.mxu0 0.0
    %1031 = vmatprep.subr.mxu0 0.0
    %1032 = vmatpush1.msra.mxu0 0.0
    %1033 = vmatprep.subr.mxu0 0.0
    %1034 = vmatpush1.msra.mxu0 0.0
    %1035 = vmatprep.subr.mxu0 0.0
    %1036 = vmatpush1.msra.mxu0 0.0
    %1037 = vmatprep.subr.mxu0 0.0
    %1038 = vmatpush1.msra.mxu0 0.0
    %1039 = vmatprep.subr.mxu0 0.0
    %1040 = vmatpush1.msra.mxu0 0.0
    %1041 = vmatprep.mubr.f32.mxu0 0.0
    %1042 = vmatmul.mubr.f32.gmra.mrb[0].mxu0 %v793
    %v1043 = vpop.f32.mrb[0].mxu0
    %v1044 = vadd.f32 0.0, %v1043
    %v1045 = vpop.f32.mrb[0].mxu0
    %1046 = vdwg.mxu0
    %1047 = vmatprep.subr.mxu0 0.0
    %1048 = vmatpush1.msra.mxu0 %v946
    %1049 = vmatprep.subr.mxu0 0.0
    %1050 = vmatpush1.msra.mxu0 %v947
    %1051 = vmatprep.subr.mxu0 0.0
    %1052 = vmatpush1.msra.mxu0 %v948
    %1053 = vmatprep.subr.mxu0 0.0
    %1054 = vmatpush1.msra.mxu0 %v949
    %1055 = vmatprep.subr.mxu0 0.0
    %1056 = vmatpush1.msra.mxu0 %v950
    %1057 = vmatprep.subr.mxu0 0.0
    %1058 = vmatpush1.msra.mxu0 %v951
    %1059 = vmatprep.subr.mxu0 0.0
    %1060 = vmatpush1.msra.mxu0 %v952
    %1061 = vmatprep.subr.mxu0 0.0
    %1062 = vmatpush1.msra.mxu0 %v953
    %1063 = vmatprep.subr.mxu0 0.0
    %1064 = vmatpush1.msra.mxu0 %v954
    %1065 = vmatprep.subr.mxu0 0.0
    %1066 = vmatpush1.msra.mxu0 %v955
    %1067 = vmatprep.subr.mxu0 0.0
    %1068 = vmatpush1.msra.mxu0 %v956
    %1069 = vmatprep.subr.mxu0 0.0
    %1070 = vmatpush1.msra.mxu0 %v957
    %1071 = vmatprep.subr.mxu0 0.0
    %1072 = vmatpush1.msra.mxu0 %v958
    %1073 = vmatprep.subr.mxu0 0.0
    %1074 = vmatpush1.msra.mxu0 %v959
    %1075 = vmatprep.subr.mxu0 0.0
    %1076 = vmatpush1.msra.mxu0 %v960
    %1077 = vmatprep.subr.mxu0 0.0
    %1078 = vmatpush1.msra.mxu0 0.0
    %1079 = vmatprep.subr.mxu0 0.0
    %1080 = vmatpush1.msra.mxu0 0.0
    %1081 = vmatprep.subr.mxu0 0.0
    %1082 = vmatpush1.msra.mxu0 0.0
    %1083 = vmatprep.subr.mxu0 0.0
    %1084 = vmatpush1.msra.mxu0 0.0
    %1085 = vmatprep.subr.mxu0 0.0
    %1086 = vmatpush1.msra.mxu0 0.0
    %1087 = vmatprep.subr.mxu0 0.0
    %1088 = vmatpush1.msra.mxu0 0.0
    %1089 = vmatprep.subr.mxu0 0.0
    %1090 = vmatpush1.msra.mxu0 0.0
    %1091 = vmatprep.subr.mxu0 0.0
    %1092 = vmatpush1.msra.mxu0 0.0
    %1093 = vmatprep.subr.mxu0 0.0
    %1094 = vmatpush1.msra.mxu0 0.0
    %1095 = vmatprep.subr.mxu0 0.0
    %1096 = vmatpush1.msra.mxu0 0.0
    %1097 = vmatprep.subr.mxu0 0.0
    %1098 = vmatpush1.msra.mxu0 0.0
    %1099 = vmatprep.subr.mxu0 0.0
    %1100 = vmatpush1.msra.mxu0 0.0
    %1101 = vmatprep.subr.mxu0 0.0
    %1102 = vmatpush1.msra.mxu0 0.0
    %1103 = vmatprep.subr.mxu0 0.0
    %1104 = vmatpush1.msra.mxu0 0.0
    %1105 = vmatprep.subr.mxu0 0.0
    %1106 = vmatpush1.msra.mxu0 0.0
    %1107 = vmatprep.subr.mxu0 0.0
    %1108 = vmatpush1.msra.mxu0 0.0
    %1109 = vmatprep.subr.mxu0 0.0
    %1110 = vmatpush1.msra.mxu0 0.0
    %1111 = vmatprep.mubr.f32.mxu0 0.0
    %1112 = vmatmul.mubr.f32.gmra.mrb[0].mxu0 %v866
    %v1113 = vpop.f32.mrb[0].mxu0
    %v1114 = vadd.f32 %v1044, %v1113
    %v1115 = vpop.f32.mrb[0].mxu0
    %1116 = vdwg.mxu0
    %v1117 = vadd.f32 %v1114, %v942
    %1119 = vrot.lane.b32.xlu0 %v944, 112
    %v1120 = vpop.permute.xlu0 %1119
    %v1122 = vmax.f32 %v944, %v1120
    %1124 = vrot.lane.b32.xlu0 %v1117, 112
    %v1125 = vpop.permute.xlu0 %1124
    %v1127 = vmax.f32 %v1117, %v1125
    %v1128 = vld [vmem:[%s8] sm:$0x1]
    %v1129 = vld [vmem:[%s7] sm:$0xff]
    %v1130 = vld [vmem:[%s7 + $0x8] sm:$0xff]
    %v1131 = vld [vmem:[%s7 + $0x10] sm:$0xff]
    %v1132 = vld [vmem:[%s7 + $0x18] sm:$0xff]
    %v1133 = vld [vmem:[%s7 + $0x20] sm:$0xff]
    %v1134 = vld [vmem:[%s7 + $0x28] sm:$0xff]
    %v1135 = vld [vmem:[%s7 + $0x30] sm:$0xff]
    %v1136 = vld [vmem:[%s7 + $0x38] sm:$0xff]
    %v1137 = vld [vmem:[%s7 + $0x40] sm:$0xff]
    %v1138 = vld [vmem:[%s7 + $0x48] sm:$0xff]
    %v1139 = vld [vmem:[%s7 + $0x50] sm:$0xff]
    %v1140 = vld [vmem:[%s7 + $0x58] sm:$0xff]
    %v1141 = vld [vmem:[%s7 + $0x60] sm:$0xff]
    %v1142 = vld [vmem:[%s7 + $0x68] sm:$0xff]
    %s1143 = scalar_lea.vmem %s7, 112
    %v1144 = vld [vmem:[%s1143] sm:$0xff]
    %v1145 = vld [vmem:[%s1143 + $0x8] sm:$0xff]
    %v1146 = vld [vmem:[%s1143 + $0x10] sm:$0xff]
    %v1147 = vld [vmem:[%s1143 + $0x18] sm:$0xff]
    %v1148 = vld [vmem:[%s1143 + $0x20] sm:$0xff]
    %v1149 = vld [vmem:[%s1143 + $0x28] sm:$0xff]
    %v1150 = vld [vmem:[%s1143 + $0x30] sm:$0xff]
    %v1151 = vld [vmem:[%s1143 + $0x38] sm:$0xff]
    %v1152 = vld [vmem:[%s1143 + $0x40] sm:$0xff]
    %v1153 = vld [vmem:[%s1143 + $0x48] sm:$0xff]
    %v1154 = vld [vmem:[%s1143 + $0x50] sm:$0xff]
    %v1155 = vld [vmem:[%s1143 + $0x58] sm:$0xff]
    %v1156 = vld [vmem:[%s1143 + $0x60] sm:$0xff]
    %v1157 = vld [vmem:[%s1143 + $0x68] sm:$0xff]
    %vm1158 = vcmask 916480
    %v1160 = vsel %vm1158, %v1127, 0
    %1162 = vmatprep.subr.mxu0 0.0
    %1163 = vmatpush1.msra.mxu0 %v1144
    %1164 = vmatprep.subr.mxu0 0.0
    %1165 = vmatpush1.msra.mxu0 %v1145
    %1166 = vmatprep.subr.mxu0 0.0
    %1167 = vmatpush1.msra.mxu0 %v1146
    %1168 = vmatprep.subr.mxu0 0.0
    %1169 = vmatpush1.msra.mxu0 %v1147
    %1170 = vmatprep.subr.mxu0 0.0
    %1171 = vmatpush1.msra.mxu0 %v1148
    %1172 = vmatprep.subr.mxu0 0.0
    %1173 = vmatpush1.msra.mxu0 %v1149
    %1174 = vmatprep.subr.mxu0 0.0
    %1175 = vmatpush1.msra.mxu0 %v1150
    %1176 = vmatprep.subr.mxu0 0.0
    %1177 = vmatpush1.msra.mxu0 %v1151
    %1178 = vmatprep.subr.mxu0 0.0
    %1179 = vmatpush1.msra.mxu0 %v1152
    %1180 = vmatprep.subr.mxu0 0.0
    %1181 = vmatpush1.msra.mxu0 %v1153
    %1182 = vmatprep.subr.mxu0 0.0
    %1183 = vmatpush1.msra.mxu0 %v1154
    %1184 = vmatprep.subr.mxu0 0.0
    %1185 = vmatpush1.msra.mxu0 %v1155
    %1186 = vmatprep.subr.mxu0 0.0
    %1187 = vmatpush1.msra.mxu0 %v1156
    %1188 = vmatprep.subr.mxu0 0.0
    %1189 = vmatpush1.msra.mxu0 %v1157
    %1190 = vmatprep.subr.mxu0 0.0
    %1191 = vmatpush1.msra.mxu0 0.0
    %1192 = vmatprep.subr.mxu0 0.0
    %1193 = vmatpush1.msra.mxu0 0.0
    %1194 = vmatprep.subr.mxu0 0.0
    %1195 = vmatpush1.msra.mxu0 0.0
    %1196 = vmatprep.subr.mxu0 0.0
    %1197 = vmatpush1.msra.mxu0 0.0
    %1198 = vmatprep.subr.mxu0 0.0
    %1199 = vmatpush1.msra.mxu0 0.0
    %1200 = vmatprep.subr.mxu0 0.0
    %1201 = vmatpush1.msra.mxu0 0.0
    %1202 = vmatprep.subr.mxu0 0.0
    %1203 = vmatpush1.msra.mxu0 0.0
    %1204 = vmatprep.subr.mxu0 0.0
    %1205 = vmatpush1.msra.mxu0 0.0
    %1206 = vmatprep.subr.mxu0 0.0
    %1207 = vmatpush1.msra.mxu0 0.0
    %1208 = vmatprep.subr.mxu0 0.0
    %1209 = vmatpush1.msra.mxu0 0.0
    %1210 = vmatprep.subr.mxu0 0.0
    %1211 = vmatpush1.msra.mxu0 0.0
    %1212 = vmatprep.subr.mxu0 0.0
    %1213 = vmatpush1.msra.mxu0 0.0
    %1214 = vmatprep.subr.mxu0 0.0
    %1215 = vmatpush1.msra.mxu0 0.0
    %1216 = vmatprep.subr.mxu0 0.0
    %1217 = vmatpush1.msra.mxu0 0.0
    %1218 = vmatprep.subr.mxu0 0.0
    %1219 = vmatpush1.msra.mxu0 0.0
    %1220 = vmatprep.subr.mxu0 0.0
    %1221 = vmatpush1.msra.mxu0 0.0
    %1222 = vmatprep.subr.mxu0 0.0
    %1223 = vmatpush1.msra.mxu0 0.0
    %1224 = vmatprep.subr.mxu0 0.0
    %1225 = vmatpush1.msra.mxu0 0.0
    %1226 = vmatprep.mubr.f32.mxu0 0.0
    %1227 = vmatmul.mubr.f32.gmra.mrb[0].mxu0 %v1160
    %v1228 = vpop.f32.mrb[0].mxu0
    %v1229 = vadd.f32 0.0, %v1228
    %v1230 = vpop.f32.mrb[0].mxu0
    %1231 = vdwg.mxu0
    %v1233 = vsel %vm1158, %v1122, 0
    %1235 = vmatprep.subr.mxu0 0.0
    %1236 = vmatpush1.msra.mxu0 %v1129
    %1237 = vmatprep.subr.mxu0 0.0
    %1238 = vmatpush1.msra.mxu0 %v1130
    %1239 = vmatprep.subr.mxu0 0.0
    %1240 = vmatpush1.msra.mxu0 %v1131
    %1241 = vmatprep.subr.mxu0 0.0
    %1242 = vmatpush1.msra.mxu0 %v1132
    %1243 = vmatprep.subr.mxu0 0.0
    %1244 = vmatpush1.msra.mxu0 %v1133
    %1245 = vmatprep.subr.mxu0 0.0
    %1246 = vmatpush1.msra.mxu0 %v1134
    %1247 = vmatprep.subr.mxu0 0.0
    %1248 = vmatpush1.msra.mxu0 %v1135
    %1249 = vmatprep.subr.mxu0 0.0
    %1250 = vmatpush1.msra.mxu0 %v1136
    %1251 = vmatprep.subr.mxu0 0.0
    %1252 = vmatpush1.msra.mxu0 %v1137
    %1253 = vmatprep.subr.mxu0 0.0
    %1254 = vmatpush1.msra.mxu0 %v1138
    %1255 = vmatprep.subr.mxu0 0.0
    %1256 = vmatpush1.msra.mxu0 %v1139
    %1257 = vmatprep.subr.mxu0 0.0
    %1258 = vmatpush1.msra.mxu0 %v1140
    %1259 = vmatprep.subr.mxu0 0.0
    %1260 = vmatpush1.msra.mxu0 %v1141
    %1261 = vmatprep.subr.mxu0 0.0
    %1262 = vmatpush1.msra.mxu0 %v1142
    %1263 = vmatprep.subr.mxu0 0.0
    %1264 = vmatpush1.msra.mxu0 0.0
    %1265 = vmatprep.subr.mxu0 0.0
    %1266 = vmatpush1.msra.mxu0 0.0
    %1267 = vmatprep.subr.mxu0 0.0
    %1268 = vmatpush1.msra.mxu0 0.0
    %1269 = vmatprep.subr.mxu0 0.0
    %1270 = vmatpush1.msra.mxu0 0.0
    %1271 = vmatprep.subr.mxu0 0.0
    %1272 = vmatpush1.msra.mxu0 0.0
    %1273 = vmatprep.subr.mxu0 0.0
    %1274 = vmatpush1.msra.mxu0 0.0
    %1275 = vmatprep.subr.mxu0 0.0
    %1276 = vmatpush1.msra.mxu0 0.0
    %1277 = vmatprep.subr.mxu0 0.0
    %1278 = vmatpush1.msra.mxu0 0.0
    %1279 = vmatprep.subr.mxu0 0.0
    %1280 = vmatpush1.msra.mxu0 0.0
    %1281 = vmatprep.subr.mxu0 0.0
    %1282 = vmatpush1.msra.mxu0 0.0
    %1283 = vmatprep.subr.mxu0 0.0
    %1284 = vmatpush1.msra.mxu0 0.0
    %1285 = vmatprep.subr.mxu0 0.0
    %1286 = vmatpush1.msra.mxu0 0.0
    %1287 = vmatprep.subr.mxu0 0.0
    %1288 = vmatpush1.msra.mxu0 0.0
    %1289 = vmatprep.subr.mxu0 0.0
    %1290 = vmatpush1.msra.mxu0 0.0
    %1291 = vmatprep.subr.mxu0 0.0
    %1292 = vmatpush1.msra.mxu0 0.0
    %1293 = vmatprep.subr.mxu0 0.0
    %1294 = vmatpush1.msra.mxu0 0.0
    %1295 = vmatprep.subr.mxu0 0.0
    %1296 = vmatpush1.msra.mxu0 0.0
    %1297 = vmatprep.subr.mxu0 0.0
    %1298 = vmatpush1.msra.mxu0 0.0
    %1299 = vmatprep.mubr.f32.mxu0 0.0
    %1300 = vmatmul.mubr.f32.gmra.mrb[0].mxu0 %v1233
    %v1301 = vpop.f32.mrb[0].mxu0
    %v1302 = vadd.f32 %v1229, %v1301
    %v1303 = vpop.f32.mrb[0].mxu0
    %1304 = vdwg.mxu0
    %v1306 = vlaneseq
    %v1307 = vshrl.u32 %v1306, 7
    %v1308 = vsub.s32 0, %v1307
    %v1309 = vrot.slane %v1128, %v1308
    %v1311 = vadd.f32 %v1302, %v1309
    %s1312 = scalar_lea.vmem %s7, 224
    %v1313 = vld [vmem:[%s1312] sm:$0xff]
    %v1314 = vld [vmem:[%s1312 + $0x8] sm:$0xff]
    %v1315 = vld [vmem:[%s1312 + $0x10] sm:$0xff]
    %v1316 = vld [vmem:[%s1312 + $0x18] sm:$0xff]
    %v1317 = vld [vmem:[%s1312 + $0x20] sm:$0xff]
    %v1318 = vld [vmem:[%s1312 + $0x28] sm:$0xff]
    %v1319 = vld [vmem:[%s1312 + $0x30] sm:$0xff]
    %v1320 = vld [vmem:[%s1312 + $0x38] sm:$0xff]
    %v1321 = vld [vmem:[%s1312 + $0x40] sm:$0xff]
    %v1322 = vld [vmem:[%s1312 + $0x48] sm:$0xff]
    %v1323 = vld [vmem:[%s1312 + $0x50] sm:$0xff]
    %v1324 = vld [vmem:[%s1312 + $0x58] sm:$0xff]
    %v1325 = vld [vmem:[%s1312 + $0x60] sm:$0xff]
    %v1326 = vld [vmem:[%s1312 + $0x68] sm:$0xff]
    %s1327 = scalar_lea.vmem %s7, 336
    %v1328 = vld [vmem:[%s1327] sm:$0xff]
    %v1329 = vld [vmem:[%s1327 + $0x8] sm:$0xff]
    %v1330 = vld [vmem:[%s1327 + $0x10] sm:$0xff]
    %v1331 = vld [vmem:[%s1327 + $0x18] sm:$0xff]
    %v1332 = vld [vmem:[%s1327 + $0x20] sm:$0xff]
    %v1333 = vld [vmem:[%s1327 + $0x28] sm:$0xff]
    %v1334 = vld [vmem:[%s1327 + $0x30] sm:$0xff]
    %v1335 = vld [vmem:[%s1327 + $0x38] sm:$0xff]
    %v1336 = vld [vmem:[%s1327 + $0x40] sm:$0xff]
    %v1337 = vld [vmem:[%s1327 + $0x48] sm:$0xff]
    %v1338 = vld [vmem:[%s1327 + $0x50] sm:$0xff]
    %v1339 = vld [vmem:[%s1327 + $0x58] sm:$0xff]
    %v1340 = vld [vmem:[%s1327 + $0x60] sm:$0xff]
    %v1341 = vld [vmem:[%s1327 + $0x68] sm:$0xff]
    %1342 = vmatprep.subr.mxu0 0.0
    %1343 = vmatpush1.msra.mxu0 %v1328
    %1344 = vmatprep.subr.mxu0 0.0
    %1345 = vmatpush1.msra.mxu0 %v1329
    %1346 = vmatprep.subr.mxu0 0.0
    %1347 = vmatpush1.msra.mxu0 %v1330
    %1348 = vmatprep.subr.mxu0 0.0
    %1349 = vmatpush1.msra.mxu0 %v1331
    %1350 = vmatprep.subr.mxu0 0.0
    %1351 = vmatpush1.msra.mxu0 %v1332
    %1352 = vmatprep.subr.mxu0 0.0
    %1353 = vmatpush1.msra.mxu0 %v1333
    %1354 = vmatprep.subr.mxu0 0.0
    %1355 = vmatpush1.msra.mxu0 %v1334
    %1356 = vmatprep.subr.mxu0 0.0
    %1357 = vmatpush1.msra.mxu0 %v1335
    %1358 = vmatprep.subr.mxu0 0.0
    %1359 = vmatpush1.msra.mxu0 %v1336
    %1360 = vmatprep.subr.mxu0 0.0
    %1361 = vmatpush1.msra.mxu0 %v1337
    %1362 = vmatprep.subr.mxu0 0.0
    %1363 = vmatpush1.msra.mxu0 %v1338
    %1364 = vmatprep.subr.mxu0 0.0
    %1365 = vmatpush1.msra.mxu0 %v1339
    %1366 = vmatprep.subr.mxu0 0.0
    %1367 = vmatpush1.msra.mxu0 %v1340
    %1368 = vmatprep.subr.mxu0 0.0
    %1369 = vmatpush1.msra.mxu0 %v1341
    %1370 = vmatprep.subr.mxu0 0.0
    %1371 = vmatpush1.msra.mxu0 0.0
    %1372 = vmatprep.subr.mxu0 0.0
    %1373 = vmatpush1.msra.mxu0 0.0
    %1374 = vmatprep.subr.mxu0 0.0
    %1375 = vmatpush1.msra.mxu0 0.0
    %1376 = vmatprep.subr.mxu0 0.0
    %1377 = vmatpush1.msra.mxu0 0.0
    %1378 = vmatprep.subr.mxu0 0.0
    %1379 = vmatpush1.msra.mxu0 0.0
    %1380 = vmatprep.subr.mxu0 0.0
    %1381 = vmatpush1.msra.mxu0 0.0
    %1382 = vmatprep.subr.mxu0 0.0
    %1383 = vmatpush1.msra.mxu0 0.0
    %1384 = vmatprep.subr.mxu0 0.0
    %1385 = vmatpush1.msra.mxu0 0.0
    %1386 = vmatprep.subr.mxu0 0.0
    %1387 = vmatpush1.msra.mxu0 0.0
    %1388 = vmatprep.subr.mxu0 0.0
    %1389 = vmatpush1.msra.mxu0 0.0
    %1390 = vmatprep.subr.mxu0 0.0
    %1391 = vmatpush1.msra.mxu0 0.0
    %1392 = vmatprep.subr.mxu0 0.0
    %1393 = vmatpush1.msra.mxu0 0.0
    %1394 = vmatprep.subr.mxu0 0.0
    %1395 = vmatpush1.msra.mxu0 0.0
    %1396 = vmatprep.subr.mxu0 0.0
    %1397 = vmatpush1.msra.mxu0 0.0
    %1398 = vmatprep.subr.mxu0 0.0
    %1399 = vmatpush1.msra.mxu0 0.0
    %1400 = vmatprep.subr.mxu0 0.0
    %1401 = vmatpush1.msra.mxu0 0.0
    %1402 = vmatprep.subr.mxu0 0.0
    %1403 = vmatpush1.msra.mxu0 0.0
    %1404 = vmatprep.subr.mxu0 0.0
    %1405 = vmatpush1.msra.mxu0 0.0
    %1406 = vmatprep.mubr.f32.mxu0 0.0
    %1407 = vmatmul.mubr.f32.gmra.mrb[0].mxu0 %v1160
    %v1408 = vpop.f32.mrb[0].mxu0
    %v1409 = vadd.f32 0.0, %v1408
    %v1410 = vpop.f32.mrb[0].mxu0
    %1411 = vdwg.mxu0
    %1412 = vmatprep.subr.mxu0 0.0
    %1413 = vmatpush1.msra.mxu0 %v1313
    %1414 = vmatprep.subr.mxu0 0.0
    %1415 = vmatpush1.msra.mxu0 %v1314
    %1416 = vmatprep.subr.mxu0 0.0
    %1417 = vmatpush1.msra.mxu0 %v1315
    %1418 = vmatprep.subr.mxu0 0.0
    %1419 = vmatpush1.msra.mxu0 %v1316
    %1420 = vmatprep.subr.mxu0 0.0
    %1421 = vmatpush1.msra.mxu0 %v1317
    %1422 = vmatprep.subr.mxu0 0.0
    %1423 = vmatpush1.msra.mxu0 %v1318
    %1424 = vmatprep.subr.mxu0 0.0
    %1425 = vmatpush1.msra.mxu0 %v1319
    %1426 = vmatprep.subr.mxu0 0.0
    %1427 = vmatpush1.msra.mxu0 %v1320
    %1428 = vmatprep.subr.mxu0 0.0
    %1429 = vmatpush1.msra.mxu0 %v1321
    %1430 = vmatprep.subr.mxu0 0.0
    %1431 = vmatpush1.msra.mxu0 %v1322
    %1432 = vmatprep.subr.mxu0 0.0
    %1433 = vmatpush1.msra.mxu0 %v1323
    %1434 = vmatprep.subr.mxu0 0.0
    %1435 = vmatpush1.msra.mxu0 %v1324
    %1436 = vmatprep.subr.mxu0 0.0
    %1437 = vmatpush1.msra.mxu0 %v1325
    %1438 = vmatprep.subr.mxu0 0.0
    %1439 = vmatpush1.msra.mxu0 %v1326
    %1440 = vmatprep.subr.mxu0 0.0
    %1441 = vmatpush1.msra.mxu0 0.0
    %1442 = vmatprep.subr.mxu0 0.0
    %1443 = vmatpush1.msra.mxu0 0.0
    %1444 = vmatprep.subr.mxu0 0.0
    %1445 = vmatpush1.msra.mxu0 0.0
    %1446 = vmatprep.subr.mxu0 0.0
    %1447 = vmatpush1.msra.mxu0 0.0
    %1448 = vmatprep.subr.mxu0 0.0
    %1449 = vmatpush1.msra.mxu0 0.0
    %1450 = vmatprep.subr.mxu0 0.0
    %1451 = vmatpush1.msra.mxu0 0.0
    %1452 = vmatprep.subr.mxu0 0.0
    %1453 = vmatpush1.msra.mxu0 0.0
    %1454 = vmatprep.subr.mxu0 0.0
    %1455 = vmatpush1.msra.mxu0 0.0
    %1456 = vmatprep.subr.mxu0 0.0
    %1457 = vmatpush1.msra.mxu0 0.0
    %1458 = vmatprep.subr.mxu0 0.0
    %1459 = vmatpush1.msra.mxu0 0.0
    %1460 = vmatprep.subr.mxu0 0.0
    %1461 = vmatpush1.msra.mxu0 0.0
    %1462 = vmatprep.subr.mxu0 0.0
    %1463 = vmatpush1.msra.mxu0 0.0
    %1464 = vmatprep.subr.mxu0 0.0
    %1465 = vmatpush1.msra.mxu0 0.0
    %1466 = vmatprep.subr.mxu0 0.0
    %1467 = vmatpush1.msra.mxu0 0.0
    %1468 = vmatprep.subr.mxu0 0.0
    %1469 = vmatpush1.msra.mxu0 0.0
    %1470 = vmatprep.subr.mxu0 0.0
    %1471 = vmatpush1.msra.mxu0 0.0
    %1472 = vmatprep.subr.mxu0 0.0
    %1473 = vmatpush1.msra.mxu0 0.0
    %1474 = vmatprep.subr.mxu0 0.0
    %1475 = vmatpush1.msra.mxu0 0.0
    %1476 = vmatprep.mubr.f32.mxu0 0.0
    %1477 = vmatmul.mubr.f32.gmra.mrb[0].mxu0 %v1233
    %v1478 = vpop.f32.mrb[0].mxu0
    %v1479 = vadd.f32 %v1409, %v1478
    %v1480 = vpop.f32.mrb[0].mxu0
    %1481 = vdwg.mxu0
    %v1482 = vadd.f32 %v1479, %v1309
    %v1483 = vmax.f32 %v1311, %v1482
    %1485 = vrot.lane.b32.xlu0 %v1483, 64
    %v1486 = vpop.permute.xlu0 %1485
    %v1488 = vmax.f32 %v1483, %v1486
    %1490 = vrot.lane.b32.xlu0 %v1488, 96
    %v1491 = vpop.permute.xlu0 %1490
    %v1493 = vmax.f32 %v1488, %v1491
    %v1494 = vand.u32 2147483647, %v1493
    %1495 = vst.msk [vmem:[%s9] sm:$0xff] %vm60, %v1494
    // Predicated region
    $region42: #{forward.1} parent=1 // pred_check
      _
    $region43: #{forward.1} parent=1 // pred_check_branch
      %1497 = sbr.rel (0) target = $region45
    $region44: #{forward.1} parent=1 // pred_region
      _
    $region45: #{forward.1} parent=1 // pred_fallthru
      _
    // Predicated region
    $region46: #{forward.1} parent=1 // pred_check
      _
    $region47: #{forward.1} parent=1 // pred_check_branch
      %1499 = sbr.rel (0) target = $region49
    $region48: #{forward.1} parent=1 // pred_region
      _
    $region49: #{forward.1} parent=1 // pred_fallthru
      _
    %1500 = vsyncpa [#allocation3], 1

</llo_original>
